<compile_context>
chip_gen: v6e
topology: v6e:2x2x1
jax: 0.10.0
libtpu: 0.0.40
codegen_flags: <defaults>
</compile_context>

<pallas_src>
import functools

import jax
import jax.numpy as jnp
from jax.experimental import pallas as pl
from jax.experimental.pallas import tpu as pltpu

LN_EPS = 1e-5


def _layer_norm(x, gamma, beta):
    # Single-pass statistics: var = E[x^2] - E[x]^2 (one fewer cross-lane
    # reduction and one fewer full-width subtract than the two-pass form).
    mean = jnp.mean(x, axis=-1, keepdims=True)
    mean_sq = jnp.mean(x * x, axis=-1, keepdims=True)
    var = mean_sq - mean * mean
    return (x - mean) * jax.lax.rsqrt(var + LN_EPS) * gamma + beta


def emotional_processor_kernel(
    bert_ref, mem_ref, prev_ref,                    # activations  [TB, D]
    w1a_ref, w1b_ref, b1_ref, g1_ref, be1_ref,      # Linear(2D->2D) split + LayerNorm(2D)
    w2_ref, b2_ref,                                 # Linear(2D->D)
    w3a_ref, w3b_ref, b3_ref, g2_ref, be2_ref,      # Linear(2D->D) split + LayerNorm(D)
    new_state_ref, processed_ref,                   # outputs      [TB, D]
):
    # MXU matmuls in bf16 with f32 accumulation; elementwise math in f32.
    bert = bert_ref[...].astype(jnp.bfloat16)
    mem = mem_ref[...].astype(jnp.bfloat16)
    prev = prev_ref[...].astype(jnp.bfloat16)

    # ---- context_processor --------------------------------------------------
    # cat([bert, mem]) @ W1 folded into two MXU accumulates (no [TB, 2D] concat
    # buffer is ever materialized in VMEM).
    h = (jnp.dot(bert, w1a_ref[...], preferred_element_type=jnp.float32)
         + jnp.dot(mem, w1b_ref[...], preferred_element_type=jnp.float32)
         + b1_ref[...])                                              # [TB, 2D]
    h = _layer_norm(h, g1_ref[...], be1_ref[...])
    h = jnp.maximum(h, 0.0)                                          # ReLU
    processed = (jnp.dot(h.astype(jnp.bfloat16), w2_ref[...],
                         preferred_element_type=jnp.float32)
                 + b2_ref[...])                                      # [TB, D]
    processed_ref[...] = processed.astype(processed_ref.dtype)

    # ---- state_integrator ---------------------------------------------------
    # cat([prev, processed]) @ W3 folded into two MXU accumulates as well.
    s = (jnp.dot(prev, w3a_ref[...], preferred_element_type=jnp.float32)
         + jnp.dot(processed.astype(jnp.bfloat16), w3b_ref[...],
                   preferred_element_type=jnp.float32)
         + b3_ref[...])                                              # [TB, D]
    s = _layer_norm(s, g2_ref[...], be2_ref[...])
    new_state_ref[...] = jnp.tanh(s).astype(new_state_ref.dtype)


@functools.partial(jax.jit, static_argnames=("block_b",))
def emotional_processor_forward(bert_context, memory_context, prev_state,
                                params, *, block_b=128):
    """Returns (new_state, processed_context), matching the PyTorch module."""
    B, D = bert_context.shape
    block_b = min(block_b, B)
    assert B % block_b == 0, "batch must be a multiple of block_b"

    (w1, b1, g1, be1, w2, b2, w3, b3, g2, be2) = params

    # Split concat-facing weights along their input dim and cast matmul weights
    # to bf16 (halves weight DMA, native MXU bf16 rate on v6e/v7x).
    w1a = w1[:D].astype(jnp.bfloat16)      # [D, 2D]
    w1b = w1[D:].astype(jnp.bfloat16)      # [D, 2D]
    w2b = w2.astype(jnp.bfloat16)          # [2D, D]
    w3a = w3[:D].astype(jnp.bfloat16)      # [D, D]
    w3b = w3[D:].astype(jnp.bfloat16)      # [D, D]

    # Batch-tiled activations; full (grid-invariant) parameters.
    act_spec = pl.BlockSpec((block_b, D), lambda i: (i, 0))
    full = lambda a: pl.BlockSpec(a.shape, lambda i: (0, 0))

    in_specs = [
        act_spec, act_spec, act_spec,                # bert, memory, prev_state
        full(w1a), full(w1b), full(b1), full(g1), full(be1),
        full(w2b), full(b2),
        full(w3a), full(w3b), full(b3), full(g2), full(be2),
    ]
    out_specs = (act_spec, act_spec)
    out_shape = (
        jax.ShapeDtypeStruct((B, D), bert_context.dtype),   # new_state
        jax.ShapeDtypeStruct((B, D), bert_context.dtype),   # processed_context
    )

    # Advisory cost hint for XLA's scheduler.
    itemsize = jnp.dtype(bert_context.dtype).itemsize
    flops = 16 * B * D * D                       # 8BD^2 + 4BD^2 + 4BD^2
    transcendentals = B * (D + 2)                # tanh per element + 2 rsqrt/row
    bytes_accessed = (5 * B * D * itemsize       # 3 inputs + 2 outputs
                      + 8 * D * D * 2            # bf16 matmul weights
                      + (4 * 2 * D + 4 * D) * 4) # biases / gammas / betas

    return pl.pallas_call(
        emotional_processor_kernel,
        out_shape=out_shape,
        grid_spec=pltpu.PrefetchScalarGridSpec(
            num_scalar_prefetch=0,
            grid=(B // block_b,),
            in_specs=in_specs,
            out_specs=out_specs,
        ),
        compiler_params=pltpu.CompilerParams(
            dimension_semantics=("parallel",),
        ),
        cost_estimate=pl.CostEstimate(
            flops=flops,
            transcendentals=transcendentals,
            bytes_accessed=bytes_accessed,
        ),
    )(bert_context, memory_context, prev_state,
      w1a, w1b, b1, g1, be1, w2b, b2, w3a, w3b, b3, g2, be2)


def init_params(key, dim):
    """Deterministic synthetic parameters (shapes from the module __init__).

    NOTE: weights are generated directly as [in, out]; real PyTorch weights
    ([out, in]) must be transposed before being fed to this kernel.
    """
    ks = jax.random.split(key, 6)
    d2 = 2 * dim
    scale1 = 1.0 / jnp.sqrt(d2)
    w1 = jax.random.uniform(ks[0], (d2, d2), jnp.float32, -scale1, scale1)
    b1 = jax.random.uniform(ks[1], (1, d2), jnp.float32, -scale1, scale1)
    g1 = jnp.ones((1, d2), jnp.float32)
    be1 = jnp.zeros((1, d2), jnp.float32)
    w2 = jax.random.uniform(ks[2], (d2, dim), jnp.float32, -scale1, scale1)
    b2 = jax.random.uniform(ks[3], (1, dim), jnp.float32, -scale1, scale1)
    w3 = jax.random.uniform(ks[4], (d2, dim), jnp.float32, -scale1, scale1)
    b3 = jax.random.uniform(ks[5], (1, dim), jnp.float32, -scale1, scale1)
    g2 = jnp.ones((1, dim), jnp.float32)
    be2 = jnp.zeros((1, dim), jnp.float32)
    return (w1, b1, g1, be1, w2, b2, w3, b3, g2, be2)


def reference_forward(bert, mem, prev, params):
    """Pure-JAX f32 reference for the correctness check."""
    (w1, b1, g1, be1, w2, b2, w3, b3, g2, be2) = params
    combined = jnp.concatenate([bert, mem], axis=-1)
    h = combined @ w1 + b1
    h = _layer_norm(h, g1, be1)
    h = jnp.maximum(h, 0.0)
    processed = h @ w2 + b2
    state_in = jnp.concatenate([prev, processed], axis=-1)
    s = state_in @ w3 + b3
    s = _layer_norm(s, g2, be2)
    return jnp.tanh(s), processed


if __name__ == "__main__":
    dim = 128
    batch = 256        # grid of 2 blocks -> both TensorCores busy on v7x
    block_b = 128

    key = jax.random.PRNGKey(0)
    k_b, k_m, k_p = jax.random.split(key, 3)
    bert_context = jax.random.normal(k_b, (batch, dim), jnp.float32)
    memory_context = jax.random.normal(k_m, (batch, dim), jnp.float32)
    # prev_state defaults to zeros in the PyTorch module when not provided.
    prev_state = jnp.zeros((batch, dim), jnp.float32)

    params = init_params(k_p, dim)

    new_state, processed = emotional_processor_forward(
        bert_context, memory_context, prev_state, params, block_b=block_b)
    jax.block_until_ready((new_state, processed))

    ref_state, ref_processed = reference_forward(
        bert_context, memory_context, prev_state, params)
    # bf16 matmuls with f32 accumulation vs. the pure-f32 reference: looser
    # tolerance than pure f32 (observed error is a few 1e-3).
    assert jnp.allclose(new_state, ref_state, atol=2e-2, rtol=2e-2)
    assert jnp.allclose(processed, ref_processed, atol=2e-2, rtol=2e-2)

    print("KERNEL_OK")
</pallas_src>

<mosaic_0001>
module attributes {stable_mosaic.version = 11 : i64} {
  func.func @emotional_processor_kernel(%arg0: i32, %arg1: memref<128x128xf32, #tpu.memory_space<vmem>>, %arg2: memref<128x128xf32, #tpu.memory_space<vmem>>, %arg3: memref<128x128xf32, #tpu.memory_space<vmem>>, %arg4: memref<128x256xbf16, #tpu.memory_space<vmem>>, %arg5: memref<128x256xbf16, #tpu.memory_space<vmem>>, %arg6: memref<1x256xf32, #tpu.memory_space<vmem>>, %arg7: memref<1x256xf32, #tpu.memory_space<vmem>>, %arg8: memref<1x256xf32, #tpu.memory_space<vmem>>, %arg9: memref<256x128xbf16, #tpu.memory_space<vmem>>, %arg10: memref<1x128xf32, #tpu.memory_space<vmem>>, %arg11: memref<128x128xbf16, #tpu.memory_space<vmem>>, %arg12: memref<128x128xbf16, #tpu.memory_space<vmem>>, %arg13: memref<1x128xf32, #tpu.memory_space<vmem>>, %arg14: memref<1x128xf32, #tpu.memory_space<vmem>>, %arg15: memref<1x128xf32, #tpu.memory_space<vmem>>, %arg16: memref<128x128xf32, #tpu.memory_space<vmem>>, %arg17: memref<128x128xf32, #tpu.memory_space<vmem>>) attributes {dimension_semantics = [#tpu.dimension_semantics<parallel>], iteration_bounds = array<i64: 2>, scalar_prefetch = 0 : i64, scratch_operands = 0 : i64, tpu.core_type = #tpu.core_type<tc>, window_params = [{transform_indices = @transform_0, window_bounds = array<i64: 128, 128>}, {transform_indices = @transform_1, window_bounds = array<i64: 128, 128>}, {transform_indices = @transform_2, window_bounds = array<i64: 128, 128>}, {pipeline_mode = #tpu.pipeline_mode<synchronous>, transform_indices = @transform_3, window_bounds = array<i64: 128, 256>}, {pipeline_mode = #tpu.pipeline_mode<synchronous>, transform_indices = @transform_4, window_bounds = array<i64: 128, 256>}, {pipeline_mode = #tpu.pipeline_mode<synchronous>, transform_indices = @transform_5, window_bounds = array<i64: 1, 256>}, {pipeline_mode = #tpu.pipeline_mode<synchronous>, transform_indices = @transform_6, window_bounds = array<i64: 1, 256>}, {pipeline_mode = #tpu.pipeline_mode<synchronous>, transform_indices = @transform_7, window_bounds = array<i64: 1, 256>}, {pipeline_mode = #tpu.pipeline_mode<synchronous>, transform_indices = @transform_8, window_bounds = array<i64: 256, 128>}, {pipeline_mode = #tpu.pipeline_mode<synchronous>, transform_indices = @transform_9, window_bounds = array<i64: 1, 128>}, {pipeline_mode = #tpu.pipeline_mode<synchronous>, transform_indices = @transform_10, window_bounds = array<i64: 128, 128>}, {pipeline_mode = #tpu.pipeline_mode<synchronous>, transform_indices = @transform_11, window_bounds = array<i64: 128, 128>}, {pipeline_mode = #tpu.pipeline_mode<synchronous>, transform_indices = @transform_12, window_bounds = array<i64: 1, 128>}, {pipeline_mode = #tpu.pipeline_mode<synchronous>, transform_indices = @transform_13, window_bounds = array<i64: 1, 128>}, {pipeline_mode = #tpu.pipeline_mode<synchronous>, transform_indices = @transform_14, window_bounds = array<i64: 1, 128>}, {transform_indices = @transform_15, window_bounds = array<i64: 128, 128>}, {transform_indices = @transform_16, window_bounds = array<i64: 128, 128>}]} {
    %c0 = arith.constant 0 : index
    %c0_0 = arith.constant 0 : index
    %0 = vector.load %arg1[%c0, %c0_0] : memref<128x128xf32, #tpu.memory_space<vmem>>, vector<128x128xf32>
    %1 = arith.truncf %0 : vector<128x128xf32> to vector<128x128xbf16>
    %c0_1 = arith.constant 0 : index
    %c0_2 = arith.constant 0 : index
    %2 = vector.load %arg2[%c0_1, %c0_2] : memref<128x128xf32, #tpu.memory_space<vmem>>, vector<128x128xf32>
    %3 = arith.truncf %2 : vector<128x128xf32> to vector<128x128xbf16>
    %c0_3 = arith.constant 0 : index
    %c0_4 = arith.constant 0 : index
    %4 = vector.load %arg3[%c0_3, %c0_4] : memref<128x128xf32, #tpu.memory_space<vmem>>, vector<128x128xf32>
    %5 = arith.truncf %4 : vector<128x128xf32> to vector<128x128xbf16>
    %c0_5 = arith.constant 0 : index
    %c0_6 = arith.constant 0 : index
    %6 = vector.load %arg4[%c0_5, %c0_6] : memref<128x256xbf16, #tpu.memory_space<vmem>>, vector<128x256xbf16>
    %cst = arith.constant dense<0.000000e+00> : vector<128x256xf32>
    %7 = tpu.matmul %1, %6, %cst {dimension_numbers = #tpu.dot_dimension_numbers<[1], [0], [0], [1], [0, 0, 1, 1], [], []>} : vector<128x128xbf16>, vector<128x256xbf16>, vector<128x256xf32> -> vector<128x256xf32>
    %c0_7 = arith.constant 0 : index
    %c0_8 = arith.constant 0 : index
    %8 = vector.load %arg5[%c0_7, %c0_8] : memref<128x256xbf16, #tpu.memory_space<vmem>>, vector<128x256xbf16>
    %cst_9 = arith.constant dense<0.000000e+00> : vector<128x256xf32>
    %9 = tpu.matmul %3, %8, %cst_9 {dimension_numbers = #tpu.dot_dimension_numbers<[1], [0], [0], [1], [0, 0, 1, 1], [], []>} : vector<128x128xbf16>, vector<128x256xbf16>, vector<128x256xf32> -> vector<128x256xf32>
    %10 = arith.addf %7, %9 : vector<128x256xf32>
    %c0_10 = arith.constant 0 : index
    %c0_11 = arith.constant 0 : index
    %11 = vector.load %arg6[%c0_10, %c0_11] : memref<1x256xf32, #tpu.memory_space<vmem>>, vector<1x256xf32>
    %12 = vector.broadcast %11 : vector<1x256xf32> to vector<128x256xf32>
    %13 = arith.addf %10, %12 : vector<128x256xf32>
    %c0_12 = arith.constant 0 : index
    %c0_13 = arith.constant 0 : index
    %14 = vector.load %arg7[%c0_12, %c0_13] : memref<1x256xf32, #tpu.memory_space<vmem>>, vector<1x256xf32>
    %c0_14 = arith.constant 0 : index
    %c0_15 = arith.constant 0 : index
    %15 = vector.load %arg8[%c0_14, %c0_15] : memref<1x256xf32, #tpu.memory_space<vmem>>, vector<1x256xf32>
    %cst_16 = arith.constant dense<0.000000e+00> : vector<128xf32>
    %16 = vector.multi_reduction <add>, %13, %cst_16 [1] : vector<128x256xf32> to vector<128xf32>
    %17 = vector.shape_cast %16 : vector<128xf32> to vector<128x1xf32>
    %cst_17 = arith.constant 2.560000e+02 : f32
    %18 = vector.broadcast %cst_17 : f32 to vector<128x1xf32>
    %19 = arith.divf %17, %18 : vector<128x1xf32>
    %20 = arith.mulf %13, %13 : vector<128x256xf32>
    %cst_18 = arith.constant dense<0.000000e+00> : vector<128xf32>
    %21 = vector.multi_reduction <add>, %20, %cst_18 [1] : vector<128x256xf32> to vector<128xf32>
    %22 = vector.shape_cast %21 : vector<128xf32> to vector<128x1xf32>
    %cst_19 = arith.constant 2.560000e+02 : f32
    %23 = vector.broadcast %cst_19 : f32 to vector<128x1xf32>
    %24 = arith.divf %22, %23 : vector<128x1xf32>
    %25 = arith.mulf %19, %19 : vector<128x1xf32>
    %26 = arith.subf %24, %25 : vector<128x1xf32>
    %27 = vector.broadcast %19 : vector<128x1xf32> to vector<128x256xf32>
    %28 = arith.subf %13, %27 : vector<128x256xf32>
    %cst_20 = arith.constant 9.99999974E-6 : f32
    %29 = vector.broadcast %cst_20 : f32 to vector<128x1xf32>
    %30 = arith.addf %26, %29 : vector<128x1xf32>
    %31 = math.rsqrt %30 : vector<128x1xf32>
    %32 = vector.broadcast %31 : vector<128x1xf32> to vector<128x256xf32>
    %33 = arith.mulf %28, %32 : vector<128x256xf32>
    %34 = vector.broadcast %14 : vector<1x256xf32> to vector<128x256xf32>
    %35 = arith.mulf %33, %34 : vector<128x256xf32>
    %36 = vector.broadcast %15 : vector<1x256xf32> to vector<128x256xf32>
    %37 = arith.addf %35, %36 : vector<128x256xf32>
    %cst_21 = arith.constant 0.000000e+00 : f32
    %38 = vector.broadcast %cst_21 : f32 to vector<128x256xf32>
    %39 = arith.maximumf %37, %38 : vector<128x256xf32>
    %40 = arith.truncf %39 : vector<128x256xf32> to vector<128x256xbf16>
    %c0_22 = arith.constant 0 : index
    %c0_23 = arith.constant 0 : index
    %41 = vector.load %arg9[%c0_22, %c0_23] : memref<256x128xbf16, #tpu.memory_space<vmem>>, vector<256x128xbf16>
    %cst_24 = arith.constant dense<0.000000e+00> : vector<128x128xf32>
    %42 = tpu.matmul %40, %41, %cst_24 {dimension_numbers = #tpu.dot_dimension_numbers<[1], [0], [0], [1], [0, 0, 1, 1], [], []>} : vector<128x256xbf16>, vector<256x128xbf16>, vector<128x128xf32> -> vector<128x128xf32>
    %c0_25 = arith.constant 0 : index
    %c0_26 = arith.constant 0 : index
    %43 = vector.load %arg10[%c0_25, %c0_26] : memref<1x128xf32, #tpu.memory_space<vmem>>, vector<1x128xf32>
    %44 = vector.broadcast %43 : vector<1x128xf32> to vector<128x128xf32>
    %45 = arith.addf %42, %44 : vector<128x128xf32>
    %c0_27 = arith.constant 0 : index
    %c0_28 = arith.constant 0 : index
    %46 = vector.load %arg17[%c0_27, %c0_28] : memref<128x128xf32, #tpu.memory_space<vmem>>, vector<128x128xf32>
    tpu.vector_store %arg17[%c0_27, %c0_28], %45 {strides = array<i32>} : memref<128x128xf32, #tpu.memory_space<vmem>>, vector<128x128xf32>,
    %c0_29 = arith.constant 0 : index
    %c0_30 = arith.constant 0 : index
    %47 = vector.load %arg11[%c0_29, %c0_30] : memref<128x128xbf16, #tpu.memory_space<vmem>>, vector<128x128xbf16>
    %cst_31 = arith.constant dense<0.000000e+00> : vector<128x128xf32>
    %48 = tpu.matmul %5, %47, %cst_31 {dimension_numbers = #tpu.dot_dimension_numbers<[1], [0], [0], [1], [0, 0, 1, 1], [], []>} : vector<128x128xbf16>, vector<128x128xbf16>, vector<128x128xf32> -> vector<128x128xf32>
    %49 = arith.truncf %45 : vector<128x128xf32> to vector<128x128xbf16>
    %c0_32 = arith.constant 0 : index
    %c0_33 = arith.constant 0 : index
    %50 = vector.load %arg12[%c0_32, %c0_33] : memref<128x128xbf16, #tpu.memory_space<vmem>>, vector<128x128xbf16>
    %cst_34 = arith.constant dense<0.000000e+00> : vector<128x128xf32>
    %51 = tpu.matmul %49, %50, %cst_34 {dimension_numbers = #tpu.dot_dimension_numbers<[1], [0], [0], [1], [0, 0, 1, 1], [], []>} : vector<128x128xbf16>, vector<128x128xbf16>, vector<128x128xf32> -> vector<128x128xf32>
    %52 = arith.addf %48, %51 : vector<128x128xf32>
    %c0_35 = arith.constant 0 : index
    %c0_36 = arith.constant 0 : index
    %53 = vector.load %arg13[%c0_35, %c0_36] : memref<1x128xf32, #tpu.memory_space<vmem>>, vector<1x128xf32>
    %54 = vector.broadcast %53 : vector<1x128xf32> to vector<128x128xf32>
    %55 = arith.addf %52, %54 : vector<128x128xf32>
    %c0_37 = arith.constant 0 : index
    %c0_38 = arith.constant 0 : index
    %56 = vector.load %arg14[%c0_37, %c0_38] : memref<1x128xf32, #tpu.memory_space<vmem>>, vector<1x128xf32>
    %c0_39 = arith.constant 0 : index
    %c0_40 = arith.constant 0 : index
    %57 = vector.load %arg15[%c0_39, %c0_40] : memref<1x128xf32, #tpu.memory_space<vmem>>, vector<1x128xf32>
    %cst_41 = arith.constant dense<0.000000e+00> : vector<128xf32>
    %58 = vector.multi_reduction <add>, %55, %cst_41 [1] : vector<128x128xf32> to vector<128xf32>
    %59 = vector.shape_cast %58 : vector<128xf32> to vector<128x1xf32>
    %cst_42 = arith.constant 1.280000e+02 : f32
    %60 = vector.broadcast %cst_42 : f32 to vector<128x1xf32>
    %61 = arith.divf %59, %60 : vector<128x1xf32>
    %62 = arith.mulf %55, %55 : vector<128x128xf32>
    %cst_43 = arith.constant dense<0.000000e+00> : vector<128xf32>
    %63 = vector.multi_reduction <add>, %62, %cst_43 [1] : vector<128x128xf32> to vector<128xf32>
    %64 = vector.shape_cast %63 : vector<128xf32> to vector<128x1xf32>
    %cst_44 = arith.constant 1.280000e+02 : f32
    %65 = vector.broadcast %cst_44 : f32 to vector<128x1xf32>
    %66 = arith.divf %64, %65 : vector<128x1xf32>
    %67 = arith.mulf %61, %61 : vector<128x1xf32>
    %68 = arith.subf %66, %67 : vector<128x1xf32>
    %69 = vector.broadcast %61 : vector<128x1xf32> to vector<128x128xf32>
    %70 = arith.subf %55, %69 : vector<128x128xf32>
    %cst_45 = arith.constant 9.99999974E-6 : f32
    %71 = vector.broadcast %cst_45 : f32 to vector<128x1xf32>
    %72 = arith.addf %68, %71 : vector<128x1xf32>
    %73 = math.rsqrt %72 : vector<128x1xf32>
    %74 = vector.broadcast %73 : vector<128x1xf32> to vector<128x128xf32>
    %75 = arith.mulf %70, %74 : vector<128x128xf32>
    %76 = vector.broadcast %56 : vector<1x128xf32> to vector<128x128xf32>
    %77 = arith.mulf %75, %76 : vector<128x128xf32>
    %78 = vector.broadcast %57 : vector<1x128xf32> to vector<128x128xf32>
    %79 = arith.addf %77, %78 : vector<128x128xf32>
    %80 = math.tanh %79 : vector<128x128xf32>
    %c0_46 = arith.constant 0 : index
    %c0_47 = arith.constant 0 : index
    %81 = vector.load %arg16[%c0_46, %c0_47] : memref<128x128xf32, #tpu.memory_space<vmem>>, vector<128x128xf32>
    tpu.vector_store %arg16[%c0_46, %c0_47], %80 {strides = array<i32>} : memref<128x128xf32, #tpu.memory_space<vmem>>, vector<128x128xf32>,
    return
  }
  func.func @transform_0(%arg0: i32) -> (i32, i32) {
    %c0_i32 = arith.constant 0 : i32
    %c0_i32_0 = arith.constant 0 : i32
    return %arg0, %c0_i32 : i32, i32
  }
  func.func @transform_1(%arg0: i32) -> (i32, i32) {
    %c0_i32 = arith.constant 0 : i32
    %c0_i32_0 = arith.constant 0 : i32
    return %arg0, %c0_i32 : i32, i32
  }
  func.func @transform_2(%arg0: i32) -> (i32, i32) {
    %c0_i32 = arith.constant 0 : i32
    %c0_i32_0 = arith.constant 0 : i32
    return %arg0, %c0_i32 : i32, i32
  }
  func.func @transform_3(%arg0: i32) -> (i32, i32) {
    %c0_i32 = arith.constant 0 : i32
    %c0_i32_0 = arith.constant 0 : i32
    %c0_i32_1 = arith.constant 0 : i32
    return %c0_i32, %c0_i32_0 : i32, i32
  }
  func.func @transform_4(%arg0: i32) -> (i32, i32) {
    %c0_i32 = arith.constant 0 : i32
    %c0_i32_0 = arith.constant 0 : i32
    %c0_i32_1 = arith.constant 0 : i32
    return %c0_i32, %c0_i32_0 : i32, i32
  }
  func.func @transform_5(%arg0: i32) -> (i32, i32) {
    %c0_i32 = arith.constant 0 : i32
    %c0_i32_0 = arith.constant 0 : i32
    %c0_i32_1 = arith.constant 0 : i32
    return %c0_i32, %c0_i32_0 : i32, i32
  }
  func.func @transform_6(%arg0: i32) -> (i32, i32) {
    %c0_i32 = arith.constant 0 : i32
    %c0_i32_0 = arith.constant 0 : i32
    %c0_i32_1 = arith.constant 0 : i32
    return %c0_i32, %c0_i32_0 : i32, i32
  }
  func.func @transform_7(%arg0: i32) -> (i32, i32) {
    %c0_i32 = arith.constant 0 : i32
    %c0_i32_0 = arith.constant 0 : i32
    %c0_i32_1 = arith.constant 0 : i32
    return %c0_i32, %c0_i32_0 : i32, i32
  }
  func.func @transform_8(%arg0: i32) -> (i32, i32) {
    %c0_i32 = arith.constant 0 : i32
    %c0_i32_0 = arith.constant 0 : i32
    %c0_i32_1 = arith.constant 0 : i32
    return %c0_i32, %c0_i32_0 : i32, i32
  }
  func.func @transform_9(%arg0: i32) -> (i32, i32) {
    %c0_i32 = arith.constant 0 : i32
    %c0_i32_0 = arith.constant 0 : i32
    %c0_i32_1 = arith.constant 0 : i32
    return %c0_i32, %c0_i32_0 : i32, i32
  }
  func.func @transform_10(%arg0: i32) -> (i32, i32) {
    %c0_i32 = arith.constant 0 : i32
    %c0_i32_0 = arith.constant 0 : i32
    %c0_i32_1 = arith.constant 0 : i32
    return %c0_i32, %c0_i32_0 : i32, i32
  }
  func.func @transform_11(%arg0: i32) -> (i32, i32) {
    %c0_i32 = arith.constant 0 : i32
    %c0_i32_0 = arith.constant 0 : i32
    %c0_i32_1 = arith.constant 0 : i32
    return %c0_i32, %c0_i32_0 : i32, i32
  }
  func.func @transform_12(%arg0: i32) -> (i32, i32) {
    %c0_i32 = arith.constant 0 : i32
    %c0_i32_0 = arith.constant 0 : i32
    %c0_i32_1 = arith.constant 0 : i32
    return %c0_i32, %c0_i32_0 : i32, i32
  }
  func.func @transform_13(%arg0: i32) -> (i32, i32) {
    %c0_i32 = arith.constant 0 : i32
    %c0_i32_0 = arith.constant 0 : i32
    %c0_i32_1 = arith.constant 0 : i32
    return %c0_i32, %c0_i32_0 : i32, i32
  }
  func.func @transform_14(%arg0: i32) -> (i32, i32) {
    %c0_i32 = arith.constant 0 : i32
    %c0_i32_0 = arith.constant 0 : i32
    %c0_i32_1 = arith.constant 0 : i32
    return %c0_i32, %c0_i32_0 : i32, i32
  }
  func.func @transform_15(%arg0: i32) -> (i32, i32) {
    %c0_i32 = arith.constant 0 : i32
    %c0_i32_0 = arith.constant 0 : i32
    return %arg0, %c0_i32 : i32, i32
  }
  func.func @transform_16(%arg0: i32) -> (i32, i32) {
    %c0_i32 = arith.constant 0 : i32
    %c0_i32_0 = arith.constant 0 : i32
    return %arg0, %c0_i32 : i32, i32
  }
}

</mosaic_0001>

<llo_original>
// kernel: emotional_processor_forward.1
$region0: #{emotional_processor_forward.1}
  #allocation0 [shape = 'u32[]', space=smem, size = 0x4, offset = 0x4, fixed_abs, tag = 'smem constant byte address 0x4 - core index']
  #allocation1 [shape = 'u32[144,128]{1,0:T(1,128)}', space=vmem, size = 0x12000, scoped, tag = 'internal scratch']
  %s0 = inlined_call_operand.vmem [shape: f32[256,128], index: 0, kind: input, shape index: {}]
  %s1 = inlined_call_operand.vmem [shape: f32[256,128], index: 1, kind: input, shape index: {}]
  %s2 = inlined_call_operand.vmem [shape: f32[256,128], index: 2, kind: input, shape index: {}]
  %s3 = inlined_call_operand.vmem [shape: bf16[128,256], index: 3, kind: input, shape index: {}]
  %s4 = inlined_call_operand.vmem [shape: bf16[128,256], index: 4, kind: input, shape index: {}]
  %s5 = inlined_call_operand.vmem [shape: f32[1,256], index: 5, kind: input, shape index: {}]
  %s6 = inlined_call_operand.vmem [shape: f32[1,256], index: 6, kind: input, shape index: {}]
  %s7 = inlined_call_operand.vmem [shape: f32[1,256], index: 7, kind: input, shape index: {}]
  %s8 = inlined_call_operand.vmem [shape: bf16[256,128], index: 8, kind: input, shape index: {}]
  %s9 = inlined_call_operand.vmem [shape: f32[1,128], index: 9, kind: input, shape index: {}]
  %s10 = inlined_call_operand.vmem [shape: bf16[128,128], index: 10, kind: input, shape index: {}]
  %s11 = inlined_call_operand.vmem [shape: bf16[128,128], index: 11, kind: input, shape index: {}]
  %s12 = inlined_call_operand.vmem [shape: f32[1,128], index: 12, kind: input, shape index: {}]
  %s13 = inlined_call_operand.vmem [shape: f32[1,128], index: 13, kind: input, shape index: {}]
  %s14 = inlined_call_operand.vmem [shape: f32[1,128], index: 14, kind: input, shape index: {}]
  %s15 = inlined_call_operand.hbm [shape: f32[256,128], index: 15, kind: output, shape index: {0}]
  %s16 = inlined_call_operand.hbm [shape: f32[256,128], index: 16, kind: output, shape index: {1}]
  %17 = xla_tuple %s15, %s16
  %s18 = sld [smem:[#allocation0]]
  $region101: #{emotional_processor_forward.1} parent=0
    _
  %s20 = ssub.s32 1, %s18
  %s21 = scalar_select 0, %s20, %s18
  $region1: #{emotional_processor_forward.1} parent=0
    #allocation2 [shape = 'u8[131072]{0}', space=vmem, size = 0x20000, scoped, tag = 'output window, operand 0']
    #allocation3 [shape = 's32[2]{0}', space=sflag, size = 0x8, scoped, tag = 'scoped memory for emotional_processor_forward.1']
    #allocation4 [shape = 'u8[131072]{0}', space=vmem, size = 0x20000, scoped, tag = 'output window, operand 1']
    #allocation5 [shape = 's32[2]{0}', space=sflag, size = 0x8, scoped, tag = 'scoped memory for emotional_processor_forward.1']
    %22 = vsyncpa [#allocation3], 0
    %s23 = scalar_lea.sflag [#allocation3], 1
    %24 = vsyncpa %s23, 0
    %25 = vsyncpa [#allocation5], 0
    %s26 = scalar_lea.sflag [#allocation5], 1
    %27 = vsyncpa %s26, 0
    loop: start=0, step=1, limit=4
    $region2: #{emotional_processor_forward.1} parent=1 // loop_pre_header
      _
    $region3: #{emotional_processor_forward.1} parent=1 // loop_header
      %s29 = sphi 0, %s33
      %p30 = scmp.ge.s32.totalorder %s29, 4
      %s39 = sphi 0, %s41
      %s42 = sphi 0, %s39
      %s43 = sphi 0, %s42
      %s59 = sphi 0, %s43
      %s65 = sphi 0, %s67
      %s68 = sphi 0, %s65
      %s69 = sphi 0, %s68
      %s85 = sphi 0, %s69
      %s91 = sphi 0, %s93
      %s94 = sphi 0, %s91
      %s95 = sphi 0, %s94
      %s111 = sphi 0, %s95
      %s115 = sphi 0, %s115
      %s117 = sphi 0, %s115
      %s118 = sphi 0, %s117
      %s132 = sphi 0, %s118
      %s136 = sphi 0, %s136
      %s138 = sphi 0, %s136
      %s139 = sphi 0, %s138
      %s153 = sphi 0, %s139
      %s157 = sphi 0, %s157
      %s159 = sphi 0, %s157
      %s160 = sphi 0, %s159
      %s174 = sphi 0, %s160
      %s178 = sphi 0, %s178
      %s180 = sphi 0, %s178
      %s181 = sphi 0, %s180
      %s195 = sphi 0, %s181
      %s199 = sphi 0, %s199
      %s201 = sphi 0, %s199
      %s202 = sphi 0, %s201
      %s216 = sphi 0, %s202
      %s220 = sphi 0, %s220
      %s222 = sphi 0, %s220
      %s223 = sphi 0, %s222
      %s237 = sphi 0, %s223
      %s241 = sphi 0, %s241
      %s243 = sphi 0, %s241
      %s244 = sphi 0, %s243
      %s258 = sphi 0, %s244
      %s262 = sphi 0, %s262
      %s264 = sphi 0, %s262
      %s265 = sphi 0, %s264
      %s279 = sphi 0, %s265
      %s283 = sphi 0, %s283
      %s285 = sphi 0, %s283
      %s286 = sphi 0, %s285
      %s300 = sphi 0, %s286
      %s304 = sphi 0, %s304
      %s306 = sphi 0, %s304
      %s307 = sphi 0, %s306
      %s321 = sphi 0, %s307
      %s325 = sphi 0, %s325
      %s327 = sphi 0, %s325
      %s328 = sphi 0, %s327
      %s342 = sphi 0, %s328
      %s346 = sphi 0, %s346
      %s348 = sphi 0, %s346
      %s349 = sphi 0, %s348
      %s363 = sphi 0, %s349
      %s369 = sphi 0, %s371
      %s372 = sphi 0, %s369
      %s373 = sphi 0, %s372
      %s389 = sphi 0, %s373
      %s395 = sphi 0, %s397
      %s398 = sphi 0, %s395
      %s399 = sphi 0, %s398
      %s415 = sphi 0, %s399
    $region4: #{emotional_processor_forward.1} parent=1 // loop_header_branch
      %32 = sbr.rel (%p30) target = $region8
    $region5: #{emotional_processor_forward.1} parent=1 // loop_body
      %s34 = ssub.s32 %s29, 1
      %s35 = ssub.s32 %s29, 2
      %s36 = sadd.s32 %s29, 1
      %s37 = ssub.s32 %s29, %s36
      %p38 = scmp.eq.s32.totalorder %s37, 0
      %s40 = sadd.s32 %s39, 1
      %s41 = scalar_select %p38, %s39, %s40
      %p44 = pneg %p38
      %p45 = scmp.eq.s32.totalorder %s29, 1
      %p46 = por %p44, %p45
      %p47 = scmp.ne.s32.totalorder %s39, %s42
      %p48 = scmp.eq.s32.totalorder %s29, 0
      %p49 = por %p47, %p48
      %p50 = scmp.ne.s32.totalorder %s39, %s42
      %p51 = scmp.eq.s32.totalorder %s34, 1
      %p52 = por %p50, %p51
      %p53 = scmp.ne.s32.totalorder %s42, %s43
      %p54 = scmp.eq.s32.totalorder %s34, 0
      %p55 = por %p53, %p54
      %p56 = scmp.ne.s32.totalorder %s42, %s43
      %p57 = scmp.eq.s32.totalorder %s35, 1
      %p58 = por %p56, %p57
      %p60 = scmp.ne.s32.totalorder %s43, %s59
      %p61 = scmp.eq.s32.totalorder %s35, 0
      %p62 = por %p60, %p61
      %s63 = ssub.s32 %s29, %s36
      %p64 = scmp.eq.s32.totalorder %s63, 0
      %s66 = sadd.s32 %s65, 1
      %s67 = scalar_select %p64, %s65, %s66
      %p70 = pneg %p64
      %p71 = scmp.eq.s32.totalorder %s29, 1
      %p72 = por %p70, %p71
      %p73 = scmp.ne.s32.totalorder %s65, %s68
      %p74 = scmp.eq.s32.totalorder %s29, 0
      %p75 = por %p73, %p74
      %p76 = scmp.ne.s32.totalorder %s65, %s68
      %p77 = scmp.eq.s32.totalorder %s34, 1
      %p78 = por %p76, %p77
      %p79 = scmp.ne.s32.totalorder %s68, %s69
      %p80 = scmp.eq.s32.totalorder %s34, 0
      %p81 = por %p79, %p80
      %p82 = scmp.ne.s32.totalorder %s68, %s69
      %p83 = scmp.eq.s32.totalorder %s35, 1
      %p84 = por %p82, %p83
      %p86 = scmp.ne.s32.totalorder %s69, %s85
      %p87 = scmp.eq.s32.totalorder %s35, 0
      %p88 = por %p86, %p87
      %s89 = ssub.s32 %s29, %s36
      %p90 = scmp.eq.s32.totalorder %s89, 0
      %s92 = sadd.s32 %s91, 1
      %s93 = scalar_select %p90, %s91, %s92
      %p96 = pneg %p90
      %p97 = scmp.eq.s32.totalorder %s29, 1
      %p98 = por %p96, %p97
      %p99 = scmp.ne.s32.totalorder %s91, %s94
      %p100 = scmp.eq.s32.totalorder %s29, 0
      %p101 = por %p99, %p100
      %p102 = scmp.ne.s32.totalorder %s91, %s94
      %p103 = scmp.eq.s32.totalorder %s34, 1
      %p104 = por %p102, %p103
      %p105 = scmp.ne.s32.totalorder %s94, %s95
      %p106 = scmp.eq.s32.totalorder %s34, 0
      %p107 = por %p105, %p106
      %p108 = scmp.ne.s32.totalorder %s94, %s95
      %p109 = scmp.eq.s32.totalorder %s35, 1
      %p110 = por %p108, %p109
      %p112 = scmp.ne.s32.totalorder %s95, %s111
      %p113 = scmp.eq.s32.totalorder %s35, 0
      %p114 = por %p112, %p113
      %s116 = sadd.s32 %s115, 1
      %p119 = scmp.eq.s32.totalorder %s29, 1
      %p120 = scmp.ne.s32.totalorder %s115, %s117
      %p121 = scmp.eq.s32.totalorder %s29, 0
      %p122 = por %p120, %p121
      %p123 = scmp.ne.s32.totalorder %s115, %s117
      %p124 = scmp.eq.s32.totalorder %s34, 1
      %p125 = por %p123, %p124
      %p126 = scmp.ne.s32.totalorder %s117, %s118
      %p127 = scmp.eq.s32.totalorder %s34, 0
      %p128 = por %p126, %p127
      %p129 = scmp.ne.s32.totalorder %s117, %s118
      %p130 = scmp.eq.s32.totalorder %s35, 1
      %p131 = por %p129, %p130
      %p133 = scmp.ne.s32.totalorder %s118, %s132
      %p134 = scmp.eq.s32.totalorder %s35, 0
      %p135 = por %p133, %p134
      %s137 = sadd.s32 %s136, 1
      %p140 = scmp.eq.s32.totalorder %s29, 1
      %p141 = scmp.ne.s32.totalorder %s136, %s138
      %p142 = scmp.eq.s32.totalorder %s29, 0
      %p143 = por %p141, %p142
      %p144 = scmp.ne.s32.totalorder %s136, %s138
      %p145 = scmp.eq.s32.totalorder %s34, 1
      %p146 = por %p144, %p145
      %p147 = scmp.ne.s32.totalorder %s138, %s139
      %p148 = scmp.eq.s32.totalorder %s34, 0
      %p149 = por %p147, %p148
      %p150 = scmp.ne.s32.totalorder %s138, %s139
      %p151 = scmp.eq.s32.totalorder %s35, 1
      %p152 = por %p150, %p151
      %p154 = scmp.ne.s32.totalorder %s139, %s153
      %p155 = scmp.eq.s32.totalorder %s35, 0
      %p156 = por %p154, %p155
      %s158 = sadd.s32 %s157, 1
      %p161 = scmp.eq.s32.totalorder %s29, 1
      %p162 = scmp.ne.s32.totalorder %s157, %s159
      %p163 = scmp.eq.s32.totalorder %s29, 0
      %p164 = por %p162, %p163
      %p165 = scmp.ne.s32.totalorder %s157, %s159
      %p166 = scmp.eq.s32.totalorder %s34, 1
      %p167 = por %p165, %p166
      %p168 = scmp.ne.s32.totalorder %s159, %s160
      %p169 = scmp.eq.s32.totalorder %s34, 0
      %p170 = por %p168, %p169
      %p171 = scmp.ne.s32.totalorder %s159, %s160
      %p172 = scmp.eq.s32.totalorder %s35, 1
      %p173 = por %p171, %p172
      %p175 = scmp.ne.s32.totalorder %s160, %s174
      %p176 = scmp.eq.s32.totalorder %s35, 0
      %p177 = por %p175, %p176
      %s179 = sadd.s32 %s178, 1
      %p182 = scmp.eq.s32.totalorder %s29, 1
      %p183 = scmp.ne.s32.totalorder %s178, %s180
      %p184 = scmp.eq.s32.totalorder %s29, 0
      %p185 = por %p183, %p184
      %p186 = scmp.ne.s32.totalorder %s178, %s180
      %p187 = scmp.eq.s32.totalorder %s34, 1
      %p188 = por %p186, %p187
      %p189 = scmp.ne.s32.totalorder %s180, %s181
      %p190 = scmp.eq.s32.totalorder %s34, 0
      %p191 = por %p189, %p190
      %p192 = scmp.ne.s32.totalorder %s180, %s181
      %p193 = scmp.eq.s32.totalorder %s35, 1
      %p194 = por %p192, %p193
      %p196 = scmp.ne.s32.totalorder %s181, %s195
      %p197 = scmp.eq.s32.totalorder %s35, 0
      %p198 = por %p196, %p197
      %s200 = sadd.s32 %s199, 1
      %p203 = scmp.eq.s32.totalorder %s29, 1
      %p204 = scmp.ne.s32.totalorder %s199, %s201
      %p205 = scmp.eq.s32.totalorder %s29, 0
      %p206 = por %p204, %p205
      %p207 = scmp.ne.s32.totalorder %s199, %s201
      %p208 = scmp.eq.s32.totalorder %s34, 1
      %p209 = por %p207, %p208
      %p210 = scmp.ne.s32.totalorder %s201, %s202
      %p211 = scmp.eq.s32.totalorder %s34, 0
      %p212 = por %p210, %p211
      %p213 = scmp.ne.s32.totalorder %s201, %s202
      %p214 = scmp.eq.s32.totalorder %s35, 1
      %p215 = por %p213, %p214
      %p217 = scmp.ne.s32.totalorder %s202, %s216
      %p218 = scmp.eq.s32.totalorder %s35, 0
      %p219 = por %p217, %p218
      %s221 = sadd.s32 %s220, 1
      %p224 = scmp.eq.s32.totalorder %s29, 1
      %p225 = scmp.ne.s32.totalorder %s220, %s222
      %p226 = scmp.eq.s32.totalorder %s29, 0
      %p227 = por %p225, %p226
      %p228 = scmp.ne.s32.totalorder %s220, %s222
      %p229 = scmp.eq.s32.totalorder %s34, 1
      %p230 = por %p228, %p229
      %p231 = scmp.ne.s32.totalorder %s222, %s223
      %p232 = scmp.eq.s32.totalorder %s34, 0
      %p233 = por %p231, %p232
      %p234 = scmp.ne.s32.totalorder %s222, %s223
      %p235 = scmp.eq.s32.totalorder %s35, 1
      %p236 = por %p234, %p235
      %p238 = scmp.ne.s32.totalorder %s223, %s237
      %p239 = scmp.eq.s32.totalorder %s35, 0
      %p240 = por %p238, %p239
      %s242 = sadd.s32 %s241, 1
      %p245 = scmp.eq.s32.totalorder %s29, 1
      %p246 = scmp.ne.s32.totalorder %s241, %s243
      %p247 = scmp.eq.s32.totalorder %s29, 0
      %p248 = por %p246, %p247
      %p249 = scmp.ne.s32.totalorder %s241, %s243
      %p250 = scmp.eq.s32.totalorder %s34, 1
      %p251 = por %p249, %p250
      %p252 = scmp.ne.s32.totalorder %s243, %s244
      %p253 = scmp.eq.s32.totalorder %s34, 0
      %p254 = por %p252, %p253
      %p255 = scmp.ne.s32.totalorder %s243, %s244
      %p256 = scmp.eq.s32.totalorder %s35, 1
      %p257 = por %p255, %p256
      %p259 = scmp.ne.s32.totalorder %s244, %s258
      %p260 = scmp.eq.s32.totalorder %s35, 0
      %p261 = por %p259, %p260
      %s263 = sadd.s32 %s262, 1
      %p266 = scmp.eq.s32.totalorder %s29, 1
      %p267 = scmp.ne.s32.totalorder %s262, %s264
      %p268 = scmp.eq.s32.totalorder %s29, 0
      %p269 = por %p267, %p268
      %p270 = scmp.ne.s32.totalorder %s262, %s264
      %p271 = scmp.eq.s32.totalorder %s34, 1
      %p272 = por %p270, %p271
      %p273 = scmp.ne.s32.totalorder %s264, %s265
      %p274 = scmp.eq.s32.totalorder %s34, 0
      %p275 = por %p273, %p274
      %p276 = scmp.ne.s32.totalorder %s264, %s265
      %p277 = scmp.eq.s32.totalorder %s35, 1
      %p278 = por %p276, %p277
      %p280 = scmp.ne.s32.totalorder %s265, %s279
      %p281 = scmp.eq.s32.totalorder %s35, 0
      %p282 = por %p280, %p281
      %s284 = sadd.s32 %s283, 1
      %p287 = scmp.eq.s32.totalorder %s29, 1
      %p288 = scmp.ne.s32.totalorder %s283, %s285
      %p289 = scmp.eq.s32.totalorder %s29, 0
      %p290 = por %p288, %p289
      %p291 = scmp.ne.s32.totalorder %s283, %s285
      %p292 = scmp.eq.s32.totalorder %s34, 1
      %p293 = por %p291, %p292
      %p294 = scmp.ne.s32.totalorder %s285, %s286
      %p295 = scmp.eq.s32.totalorder %s34, 0
      %p296 = por %p294, %p295
      %p297 = scmp.ne.s32.totalorder %s285, %s286
      %p298 = scmp.eq.s32.totalorder %s35, 1
      %p299 = por %p297, %p298
      %p301 = scmp.ne.s32.totalorder %s286, %s300
      %p302 = scmp.eq.s32.totalorder %s35, 0
      %p303 = por %p301, %p302
      %s305 = sadd.s32 %s304, 1
      %p308 = scmp.eq.s32.totalorder %s29, 1
      %p309 = scmp.ne.s32.totalorder %s304, %s306
      %p310 = scmp.eq.s32.totalorder %s29, 0
      %p311 = por %p309, %p310
      %p312 = scmp.ne.s32.totalorder %s304, %s306
      %p313 = scmp.eq.s32.totalorder %s34, 1
      %p314 = por %p312, %p313
      %p315 = scmp.ne.s32.totalorder %s306, %s307
      %p316 = scmp.eq.s32.totalorder %s34, 0
      %p317 = por %p315, %p316
      %p318 = scmp.ne.s32.totalorder %s306, %s307
      %p319 = scmp.eq.s32.totalorder %s35, 1
      %p320 = por %p318, %p319
      %p322 = scmp.ne.s32.totalorder %s307, %s321
      %p323 = scmp.eq.s32.totalorder %s35, 0
      %p324 = por %p322, %p323
      %s326 = sadd.s32 %s325, 1
      %p329 = scmp.eq.s32.totalorder %s29, 1
      %p330 = scmp.ne.s32.totalorder %s325, %s327
      %p331 = scmp.eq.s32.totalorder %s29, 0
      %p332 = por %p330, %p331
      %p333 = scmp.ne.s32.totalorder %s325, %s327
      %p334 = scmp.eq.s32.totalorder %s34, 1
      %p335 = por %p333, %p334
      %p336 = scmp.ne.s32.totalorder %s327, %s328
      %p337 = scmp.eq.s32.totalorder %s34, 0
      %p338 = por %p336, %p337
      %p339 = scmp.ne.s32.totalorder %s327, %s328
      %p340 = scmp.eq.s32.totalorder %s35, 1
      %p341 = por %p339, %p340
      %p343 = scmp.ne.s32.totalorder %s328, %s342
      %p344 = scmp.eq.s32.totalorder %s35, 0
      %p345 = por %p343, %p344
      %s347 = sadd.s32 %s346, 1
      %p350 = scmp.eq.s32.totalorder %s29, 1
      %p351 = scmp.ne.s32.totalorder %s346, %s348
      %p352 = scmp.eq.s32.totalorder %s29, 0
      %p353 = por %p351, %p352
      %p354 = scmp.ne.s32.totalorder %s346, %s348
      %p355 = scmp.eq.s32.totalorder %s34, 1
      %p356 = por %p354, %p355
      %p357 = scmp.ne.s32.totalorder %s348, %s349
      %p358 = scmp.eq.s32.totalorder %s34, 0
      %p359 = por %p357, %p358
      %p360 = scmp.ne.s32.totalorder %s348, %s349
      %p361 = scmp.eq.s32.totalorder %s35, 1
      %p362 = por %p360, %p361
      %p364 = scmp.ne.s32.totalorder %s349, %s363
      %p365 = scmp.eq.s32.totalorder %s35, 0
      %p366 = por %p364, %p365
      %s367 = ssub.s32 %s29, %s36
      %p368 = scmp.eq.s32.totalorder %s367, 0
      %s370 = sadd.s32 %s369, 1
      %s371 = scalar_select %p368, %s369, %s370
      %p374 = pneg %p368
      %p375 = scmp.eq.s32.totalorder %s29, 1
      %p376 = por %p374, %p375
      %p377 = scmp.ne.s32.totalorder %s369, %s372
      %p378 = scmp.eq.s32.totalorder %s29, 0
      %p379 = por %p377, %p378
      %p380 = scmp.ne.s32.totalorder %s369, %s372
      %p381 = scmp.eq.s32.totalorder %s34, 1
      %p382 = por %p380, %p381
      %p383 = scmp.ne.s32.totalorder %s372, %s373
      %p384 = scmp.eq.s32.totalorder %s34, 0
      %p385 = por %p383, %p384
      %p386 = scmp.ne.s32.totalorder %s372, %s373
      %p387 = scmp.eq.s32.totalorder %s35, 1
      %p388 = por %p386, %p387
      %p390 = scmp.ne.s32.totalorder %s373, %s389
      %p391 = scmp.eq.s32.totalorder %s35, 0
      %p392 = por %p390, %p391
      %s393 = ssub.s32 %s29, %s36
      %p394 = scmp.eq.s32.totalorder %s393, 0
      %s396 = sadd.s32 %s395, 1
      %s397 = scalar_select %p394, %s395, %s396
      %p400 = pneg %p394
      %p401 = scmp.eq.s32.totalorder %s29, 1
      %p402 = por %p400, %p401
      %p403 = scmp.ne.s32.totalorder %s395, %s398
      %p404 = scmp.eq.s32.totalorder %s29, 0
      %p405 = por %p403, %p404
      %p406 = scmp.ne.s32.totalorder %s395, %s398
      %p407 = scmp.eq.s32.totalorder %s34, 1
      %p408 = por %p406, %p407
      %p409 = scmp.ne.s32.totalorder %s398, %s399
      %p410 = scmp.eq.s32.totalorder %s34, 0
      %p411 = por %p409, %p410
      %p412 = scmp.ne.s32.totalorder %s398, %s399
      %p413 = scmp.eq.s32.totalorder %s35, 1
      %p414 = por %p412, %p413
      %p416 = scmp.ne.s32.totalorder %s399, %s415
      %p417 = scmp.eq.s32.totalorder %s35, 0
      %p418 = por %p416, %p417
      %p419 = scmp.le.s32.totalorder 1, %s29
      %p420 = scmp.lt.s32.totalorder %s29, 3
      %p421 = pnand %p419, %p420
      %p422 = pneg %p421
      // Predicated region
      $region9: #{emotional_processor_forward.1} parent=5 // pred_check
        _
      $region10: #{emotional_processor_forward.1} parent=5 // pred_check_branch
        %424 = sbr.rel (%p421) target = $region12
      $region11: #{emotional_processor_forward.1} parent=5 // pred_region
        %s425 = ssub.s32 %s29, 1
        // Predicated region
        $region13: #{emotional_processor_forward.1} parent=11 // pred_check
          %p426 = pneg %p128
        $region14: #{emotional_processor_forward.1} parent=11 // pred_check_branch
          %428 = sbr.rel (%p426) target = $region16
        $region15: #{emotional_processor_forward.1} parent=11 // pred_region
          _
        $region16: #{emotional_processor_forward.1} parent=11 // pred_fallthru
          _
        // Predicated region
        $region17: #{emotional_processor_forward.1} parent=11 // pred_check
          %p429 = pneg %p149
        $region18: #{emotional_processor_forward.1} parent=11 // pred_check_branch
          %431 = sbr.rel (%p429) target = $region20
        $region19: #{emotional_processor_forward.1} parent=11 // pred_region
          _
        $region20: #{emotional_processor_forward.1} parent=11 // pred_fallthru
          _
        // Predicated region
        $region21: #{emotional_processor_forward.1} parent=11 // pred_check
          %p432 = pneg %p170
        $region22: #{emotional_processor_forward.1} parent=11 // pred_check_branch
          %434 = sbr.rel (%p432) target = $region24
        $region23: #{emotional_processor_forward.1} parent=11 // pred_region
          _
        $region24: #{emotional_processor_forward.1} parent=11 // pred_fallthru
          _
        // Predicated region
        $region25: #{emotional_processor_forward.1} parent=11 // pred_check
          %p435 = pneg %p191
        $region26: #{emotional_processor_forward.1} parent=11 // pred_check_branch
          %437 = sbr.rel (%p435) target = $region28
        $region27: #{emotional_processor_forward.1} parent=11 // pred_region
          _
        $region28: #{emotional_processor_forward.1} parent=11 // pred_fallthru
          _
        // Predicated region
        $region29: #{emotional_processor_forward.1} parent=11 // pred_check
          %p438 = pneg %p212
        $region30: #{emotional_processor_forward.1} parent=11 // pred_check_branch
          %440 = sbr.rel (%p438) target = $region32
        $region31: #{emotional_processor_forward.1} parent=11 // pred_region
          _
        $region32: #{emotional_processor_forward.1} parent=11 // pred_fallthru
          _
        // Predicated region
        $region33: #{emotional_processor_forward.1} parent=11 // pred_check
          %p441 = pneg %p233
        $region34: #{emotional_processor_forward.1} parent=11 // pred_check_branch
          %443 = sbr.rel (%p441) target = $region36
        $region35: #{emotional_processor_forward.1} parent=11 // pred_region
          _
        $region36: #{emotional_processor_forward.1} parent=11 // pred_fallthru
          _
        // Predicated region
        $region37: #{emotional_processor_forward.1} parent=11 // pred_check
          %p444 = pneg %p254
        $region38: #{emotional_processor_forward.1} parent=11 // pred_check_branch
          %446 = sbr.rel (%p444) target = $region40
        $region39: #{emotional_processor_forward.1} parent=11 // pred_region
          _
        $region40: #{emotional_processor_forward.1} parent=11 // pred_fallthru
          _
        // Predicated region
        $region41: #{emotional_processor_forward.1} parent=11 // pred_check
          %p447 = pneg %p275
        $region42: #{emotional_processor_forward.1} parent=11 // pred_check_branch
          %449 = sbr.rel (%p447) target = $region44
        $region43: #{emotional_processor_forward.1} parent=11 // pred_region
          _
        $region44: #{emotional_processor_forward.1} parent=11 // pred_fallthru
          _
        // Predicated region
        $region45: #{emotional_processor_forward.1} parent=11 // pred_check
          %p450 = pneg %p296
        $region46: #{emotional_processor_forward.1} parent=11 // pred_check_branch
          %452 = sbr.rel (%p450) target = $region48
        $region47: #{emotional_processor_forward.1} parent=11 // pred_region
          _
        $region48: #{emotional_processor_forward.1} parent=11 // pred_fallthru
          _
        // Predicated region
        $region49: #{emotional_processor_forward.1} parent=11 // pred_check
          %p453 = pneg %p317
        $region50: #{emotional_processor_forward.1} parent=11 // pred_check_branch
          %455 = sbr.rel (%p453) target = $region52
        $region51: #{emotional_processor_forward.1} parent=11 // pred_region
          _
        $region52: #{emotional_processor_forward.1} parent=11 // pred_fallthru
          _
        // Predicated region
        $region53: #{emotional_processor_forward.1} parent=11 // pred_check
          %p456 = pneg %p338
        $region54: #{emotional_processor_forward.1} parent=11 // pred_check_branch
          %458 = sbr.rel (%p456) target = $region56
        $region55: #{emotional_processor_forward.1} parent=11 // pred_region
          _
        $region56: #{emotional_processor_forward.1} parent=11 // pred_fallthru
          _
        // Predicated region
        $region57: #{emotional_processor_forward.1} parent=11 // pred_check
          %p459 = pneg %p359
        $region58: #{emotional_processor_forward.1} parent=11 // pred_check_branch
          %461 = sbr.rel (%p459) target = $region60
        $region59: #{emotional_processor_forward.1} parent=11 // pred_region
          _
        $region60: #{emotional_processor_forward.1} parent=11 // pred_fallthru
          _
      $region12: #{emotional_processor_forward.1} parent=5 // pred_fallthru
        _
      %p462 = scmp.lt.s32.totalorder %s29, 2
      // Predicated region
      $region61: #{emotional_processor_forward.1} parent=5 // pred_check
        %p463 = pneg %p462
      $region62: #{emotional_processor_forward.1} parent=5 // pred_check_branch
        %465 = sbr.rel (%p463) target = $region64
      $region63: #{emotional_processor_forward.1} parent=5 // pred_region
        // Predicated region
        $region65: #{emotional_processor_forward.1} parent=63 // pred_check
          %p466 = pneg %p49
        $region66: #{emotional_processor_forward.1} parent=63 // pred_check_branch
          %468 = sbr.rel (%p466) target = $region68
        $region67: #{emotional_processor_forward.1} parent=63 // pred_region
          %s469 = smul.u32 16, %s29
          %p470 = scmp.lt.s32.totalorder %s469, 31
          %s471 = scalar_select %p470, %s469, 31
          %s472 = smul.addr %s471, 8
          %s473 = scalar_lea.vmem %s0, %s472
          %s474 = smul.u32 16, %s29
        $region68: #{emotional_processor_forward.1} parent=63 // pred_fallthru
          _
        // Predicated region
        $region69: #{emotional_processor_forward.1} parent=63 // pred_check
          %p475 = pneg %p75
        $region70: #{emotional_processor_forward.1} parent=63 // pred_check_branch
          %477 = sbr.rel (%p475) target = $region72
        $region71: #{emotional_processor_forward.1} parent=63 // pred_region
          %s478 = smul.u32 16, %s29
          %p479 = scmp.lt.s32.totalorder %s478, 31
          %s480 = scalar_select %p479, %s478, 31
          %s481 = smul.addr %s480, 8
          %s482 = scalar_lea.vmem %s1, %s481
          %s483 = smul.u32 16, %s29
        $region72: #{emotional_processor_forward.1} parent=63 // pred_fallthru
          _
        // Predicated region
        $region73: #{emotional_processor_forward.1} parent=63 // pred_check
          %p484 = pneg %p101
        $region74: #{emotional_processor_forward.1} parent=63 // pred_check_branch
          %486 = sbr.rel (%p484) target = $region76
        $region75: #{emotional_processor_forward.1} parent=63 // pred_region
          %s487 = smul.u32 16, %s29
          %p488 = scmp.lt.s32.totalorder %s487, 31
          %s489 = scalar_select %p488, %s487, 31
          %s490 = smul.addr %s489, 8
          %s491 = scalar_lea.vmem %s2, %s490
          %s492 = smul.u32 16, %s29
        $region76: #{emotional_processor_forward.1} parent=63 // pred_fallthru
          _
      $region64: #{emotional_processor_forward.1} parent=5 // pred_fallthru
        _
      %p493 = scmp.le.s32.totalorder 1, %s29
      %p494 = scmp.lt.s32.totalorder %s29, 3
      %p495 = pnand %p493, %p494
      %p496 = pneg %p495
      // Predicated region
      $region77: #{emotional_processor_forward.1} parent=5 // pred_check
        _
      $region78: #{emotional_processor_forward.1} parent=5 // pred_check_branch
        %498 = sbr.rel (%p495) target = $region80
      $region79: #{emotional_processor_forward.1} parent=5 // pred_region
        %s499 = ssub.s32 %s29, 1
        %s500 = smul.u32 16, %s34
        %p501 = scmp.lt.s32.totalorder %s500, 31
        %s502 = scalar_select %p501, %s500, 31
        %s503 = smul.addr %s502, 8
        %s504 = scalar_lea.vmem %s0, %s503
        %p505 = pneg %p55
        %p506 = pneg %p52
        %s507 = smul.u32 16, %s34
        %p508 = scmp.lt.s32.totalorder %s507, 31
        %s509 = scalar_select %p508, %s507, 31
        %s510 = smul.addr %s509, 8
        %s511 = scalar_lea.vmem %s1, %s510
        %p512 = pneg %p81
        %p513 = pneg %p78
        %s514 = smul.u32 16, %s34
        %p515 = scmp.lt.s32.totalorder %s514, 31
        %s516 = scalar_select %p515, %s514, 31
        %s517 = smul.addr %s516, 8
        %s518 = scalar_lea.vmem %s2, %s517
        %p519 = pneg %p107
        %p520 = pneg %p104
        %p521 = pneg %p128
        %p522 = pneg %p125
        %p523 = pneg %p149
        %p524 = pneg %p146
        %p525 = pneg %p170
        %p526 = pneg %p167
        %p527 = pneg %p191
        %p528 = pneg %p188
        %p529 = pneg %p212
        %p530 = pneg %p209
        %p531 = pneg %p233
        %p532 = pneg %p230
        %p533 = pneg %p254
        %p534 = pneg %p251
        %p535 = pneg %p275
        %p536 = pneg %p272
        %p537 = pneg %p296
        %p538 = pneg %p293
        %p539 = pneg %p317
        %p540 = pneg %p314
        %p541 = pneg %p338
        %p542 = pneg %p335
        %p543 = pneg %p359
        %p544 = pneg %p356
        %p545 = pneg %p385
        %p546 = pneg %p382
        %s547 = sand.u32 %s372, 1
        %s548 = scalar_lea.sflag [#allocation3], %s547
        %s549 = sand.u32 %s372, 1
        %s550 = smul.addr %s549, 128
        %s551 = scalar_lea.vmem [#allocation2], %s550
        %p552 = pneg %p411
        %p553 = pneg %p408
        %s554 = sand.u32 %s398, 1
        %s555 = scalar_lea.sflag [#allocation5], %s554
        %s556 = sand.u32 %s398, 1
        %s557 = smul.addr %s556, 128
        %s558 = scalar_lea.vmem [#allocation4], %s557
        %s559 = smul.u32 16, %s34
        %p560 = scmp.lt.s32.totalorder %s559, 31
        %s561 = scalar_select %p560, %s559, 31
        %s562 = smul.addr %s561, 8
        %s563 = scalar_lea.vmem %s0, %s562
        %s564 = smul.u32 16, %s34
        %s565 = smul.u32 16, %s34
        %p566 = scmp.lt.s32.totalorder %s565, 31
        %s567 = scalar_select %p566, %s565, 31
        %s568 = smul.addr %s567, 8
        %s569 = scalar_lea.vmem %s1, %s568
        %s570 = smul.u32 16, %s34
        %s571 = smul.u32 16, %s34
        %p572 = scmp.lt.s32.totalorder %s571, 31
        %s573 = scalar_select %p572, %s571, 31
        %s574 = smul.addr %s573, 8
        %s575 = scalar_lea.vmem %s2, %s574
        %s576 = smul.u32 16, %s34
        %s577 = smul.u32 16, %s34
        %s578 = smul.u32 16, %s34
        %v580 = vld [vmem:[%s563] sm:$0xff]
        %v581 = vld [vmem:[%s563 + $0x8] sm:$0xff]
        %v582 = vld [vmem:[%s563 + $0x10] sm:$0xff]
        %v583 = vld [vmem:[%s563 + $0x18] sm:$0xff]
        %v584 = vld [vmem:[%s563 + $0x20] sm:$0xff]
        %v585 = vld [vmem:[%s563 + $0x28] sm:$0xff]
        %v586 = vld [vmem:[%s563 + $0x30] sm:$0xff]
        %v587 = vld [vmem:[%s563 + $0x38] sm:$0xff]
        %v588 = vld [vmem:[%s563 + $0x40] sm:$0xff]
        %v589 = vld [vmem:[%s563 + $0x48] sm:$0xff]
        %v590 = vld [vmem:[%s563 + $0x50] sm:$0xff]
        %v591 = vld [vmem:[%s563 + $0x58] sm:$0xff]
        %v592 = vld [vmem:[%s563 + $0x60] sm:$0xff]
        %v593 = vld [vmem:[%s563 + $0x68] sm:$0xff]
        %v594 = vld [vmem:[%s563 + $0x70] sm:$0xff]
        %v595 = vld [vmem:[%s563 + $0x78] sm:$0xff]
        %v596 = vpack.c.bf16 %v581, %v580
        %v597 = vpack.c.bf16 %v583, %v582
        %v598 = vpack.c.bf16 %v585, %v584
        %v599 = vpack.c.bf16 %v587, %v586
        %v600 = vpack.c.bf16 %v589, %v588
        %v601 = vpack.c.bf16 %v591, %v590
        %v602 = vpack.c.bf16 %v593, %v592
        %v603 = vpack.c.bf16 %v595, %v594
        %v604 = vld [vmem:[%s569] sm:$0xff]
        %v605 = vld [vmem:[%s569 + $0x8] sm:$0xff]
        %v606 = vld [vmem:[%s569 + $0x10] sm:$0xff]
        %v607 = vld [vmem:[%s569 + $0x18] sm:$0xff]
        %v608 = vld [vmem:[%s569 + $0x20] sm:$0xff]
        %v609 = vld [vmem:[%s569 + $0x28] sm:$0xff]
        %v610 = vld [vmem:[%s569 + $0x30] sm:$0xff]
        %v611 = vld [vmem:[%s569 + $0x38] sm:$0xff]
        %v612 = vld [vmem:[%s569 + $0x40] sm:$0xff]
        %v613 = vld [vmem:[%s569 + $0x48] sm:$0xff]
        %v614 = vld [vmem:[%s569 + $0x50] sm:$0xff]
        %v615 = vld [vmem:[%s569 + $0x58] sm:$0xff]
        %v616 = vld [vmem:[%s569 + $0x60] sm:$0xff]
        %v617 = vld [vmem:[%s569 + $0x68] sm:$0xff]
        %v618 = vld [vmem:[%s569 + $0x70] sm:$0xff]
        %v619 = vld [vmem:[%s569 + $0x78] sm:$0xff]
        %v620 = vpack.c.bf16 %v605, %v604
        %v621 = vpack.c.bf16 %v607, %v606
        %v622 = vpack.c.bf16 %v609, %v608
        %v623 = vpack.c.bf16 %v611, %v610
        %v624 = vpack.c.bf16 %v613, %v612
        %v625 = vpack.c.bf16 %v615, %v614
        %v626 = vpack.c.bf16 %v617, %v616
        %v627 = vpack.c.bf16 %v619, %v618
        %v628 = vld [vmem:[%s575] sm:$0xff]
        %v629 = vld [vmem:[%s575 + $0x8] sm:$0xff]
        %v630 = vld [vmem:[%s575 + $0x10] sm:$0xff]
        %v631 = vld [vmem:[%s575 + $0x18] sm:$0xff]
        %v632 = vld [vmem:[%s575 + $0x20] sm:$0xff]
        %v633 = vld [vmem:[%s575 + $0x28] sm:$0xff]
        %v634 = vld [vmem:[%s575 + $0x30] sm:$0xff]
        %v635 = vld [vmem:[%s575 + $0x38] sm:$0xff]
        %v636 = vld [vmem:[%s575 + $0x40] sm:$0xff]
        %v637 = vld [vmem:[%s575 + $0x48] sm:$0xff]
        %v638 = vld [vmem:[%s575 + $0x50] sm:$0xff]
        %v639 = vld [vmem:[%s575 + $0x58] sm:$0xff]
        %v640 = vld [vmem:[%s575 + $0x60] sm:$0xff]
        %v641 = vld [vmem:[%s575 + $0x68] sm:$0xff]
        %v642 = vld [vmem:[%s575 + $0x70] sm:$0xff]
        %v643 = vld [vmem:[%s575 + $0x78] sm:$0xff]
        %v644 = vpack.c.bf16 %v629, %v628
        %v645 = vpack.c.bf16 %v631, %v630
        %v646 = vpack.c.bf16 %v633, %v632
        %v647 = vpack.c.bf16 %v635, %v634
        %v648 = vpack.c.bf16 %v637, %v636
        %v649 = vpack.c.bf16 %v639, %v638
        %v650 = vpack.c.bf16 %v641, %v640
        %v651 = vpack.c.bf16 %v643, %v642
        %v652 = vld [vmem:[%s3] sm:$0xff]
        %v653 = vld [vmem:[%s3 + $0x8] sm:$0xff]
        %v654 = vld [vmem:[%s3 + $0x10] sm:$0xff]
        %v655 = vld [vmem:[%s3 + $0x18] sm:$0xff]
        %v656 = vld [vmem:[%s3 + $0x20] sm:$0xff]
        %v657 = vld [vmem:[%s3 + $0x28] sm:$0xff]
        %v658 = vld [vmem:[%s3 + $0x30] sm:$0xff]
        %v659 = vld [vmem:[%s3 + $0x38] sm:$0xff]
        %v660 = vld [vmem:[%s3 + $0x40] sm:$0xff]
        %v661 = vld [vmem:[%s3 + $0x48] sm:$0xff]
        %v662 = vld [vmem:[%s3 + $0x50] sm:$0xff]
        %v663 = vld [vmem:[%s3 + $0x58] sm:$0xff]
        %v664 = vld [vmem:[%s3 + $0x60] sm:$0xff]
        %v665 = vld [vmem:[%s3 + $0x68] sm:$0xff]
        %v666 = vld [vmem:[%s3 + $0x70] sm:$0xff]
        %v667 = vld [vmem:[%s3 + $0x78] sm:$0xff]
        %v668 = vld [vmem:[%s4] sm:$0xff]
        %v669 = vld [vmem:[%s4 + $0x8] sm:$0xff]
        %v670 = vld [vmem:[%s4 + $0x10] sm:$0xff]
        %v671 = vld [vmem:[%s4 + $0x18] sm:$0xff]
        %v672 = vld [vmem:[%s4 + $0x20] sm:$0xff]
        %v673 = vld [vmem:[%s4 + $0x28] sm:$0xff]
        %v674 = vld [vmem:[%s4 + $0x30] sm:$0xff]
        %v675 = vld [vmem:[%s4 + $0x38] sm:$0xff]
        %v676 = vld [vmem:[%s4 + $0x40] sm:$0xff]
        %v677 = vld [vmem:[%s4 + $0x48] sm:$0xff]
        %v678 = vld [vmem:[%s4 + $0x50] sm:$0xff]
        %v679 = vld [vmem:[%s4 + $0x58] sm:$0xff]
        %v680 = vld [vmem:[%s4 + $0x60] sm:$0xff]
        %v681 = vld [vmem:[%s4 + $0x68] sm:$0xff]
        %v682 = vld [vmem:[%s4 + $0x70] sm:$0xff]
        %v683 = vld [vmem:[%s4 + $0x78] sm:$0xff]
        %v700 = vunpack.c.l.b16 %v668
        %v701 = vunpack.c.h.b16 %v668
        %v702 = vunpack.c.l.b16 %v669
        %v703 = vunpack.c.h.b16 %v669
        %v704 = vunpack.c.l.b16 %v670
        %v705 = vunpack.c.h.b16 %v670
        %v706 = vunpack.c.l.b16 %v671
        %v707 = vunpack.c.h.b16 %v671
        %v708 = vunpack.c.l.b16 %v672
        %v709 = vunpack.c.h.b16 %v672
        %v710 = vunpack.c.l.b16 %v673
        %v711 = vunpack.c.h.b16 %v673
        %v712 = vunpack.c.l.b16 %v674
        %v713 = vunpack.c.h.b16 %v674
        %v714 = vunpack.c.l.b16 %v675
        %v715 = vunpack.c.h.b16 %v675
        %v716 = vunpack.c.l.b16 %v676
        %v717 = vunpack.c.h.b16 %v676
        %v718 = vunpack.c.l.b16 %v677
        %v719 = vunpack.c.h.b16 %v677
        %v720 = vunpack.c.l.b16 %v678
        %v721 = vunpack.c.h.b16 %v678
        %v722 = vunpack.c.l.b16 %v679
        %v723 = vunpack.c.h.b16 %v679
        %v724 = vunpack.c.l.b16 %v680
        %v725 = vunpack.c.h.b16 %v680
        %v726 = vunpack.c.l.b16 %v681
        %v727 = vunpack.c.h.b16 %v681
        %v728 = vunpack.c.l.b16 %v682
        %v729 = vunpack.c.h.b16 %v682
        %v730 = vunpack.c.l.b16 %v683
        %v731 = vunpack.c.h.b16 %v683
        %v732 = vpack.c.b16 %v702, %v700
        %v733 = vpack.c.b16 %v703, %v701
        %v734 = vpack.c.b16 %v706, %v704
        %v735 = vpack.c.b16 %v707, %v705
        %v736 = vpack.c.b16 %v710, %v708
        %v737 = vpack.c.b16 %v711, %v709
        %v738 = vpack.c.b16 %v714, %v712
        %v739 = vpack.c.b16 %v715, %v713
        %v740 = vpack.c.b16 %v718, %v716
        %v741 = vpack.c.b16 %v719, %v717
        %v742 = vpack.c.b16 %v722, %v720
        %v743 = vpack.c.b16 %v723, %v721
        %v744 = vpack.c.b16 %v726, %v724
        %v745 = vpack.c.b16 %v727, %v725
        %v746 = vpack.c.b16 %v730, %v728
        %v747 = vpack.c.b16 %v731, %v729
        %764 = vmatprep.subr.bf16.mxu0 %v747
        %765 = vmatpush1.bf16.msra.mxu0 %v746
        %766 = vmatprep.subr.bf16.mxu0 %v745
        %767 = vmatpush1.bf16.msra.mxu0 %v744
        %768 = vmatprep.subr.bf16.mxu0 %v743
        %769 = vmatpush1.bf16.msra.mxu0 %v742
        %770 = vmatprep.subr.bf16.mxu0 %v741
        %771 = vmatpush1.bf16.msra.mxu0 %v740
        %772 = vmatprep.subr.bf16.mxu0 %v739
        %773 = vmatpush1.bf16.msra.mxu0 %v738
        %774 = vmatprep.subr.bf16.mxu0 %v737
        %775 = vmatpush1.bf16.msra.mxu0 %v736
        %776 = vmatprep.subr.bf16.mxu0 %v735
        %777 = vmatpush1.bf16.msra.mxu0 %v734
        %778 = vmatprep.subr.bf16.mxu0 %v733
        %779 = vmatpush1.bf16.msra.mxu0 %v732
        %780 = vmatprep.subr.bf16.mxu0 0
        %781 = vmatpush2.bf16.msra.mxu0 0
        %782 = vmatprep.subr.bf16.mxu0 0
        %783 = vmatpush2.bf16.msra.mxu0 0
        %784 = vmatprep.subr.bf16.mxu0 0
        %785 = vmatpush2.bf16.msra.mxu0 0
        %786 = vmatprep.subr.bf16.mxu0 0
        %787 = vmatpush2.bf16.msra.mxu0 0
        %788 = vmatprep.subr.bf16.mxu0 0
        %789 = vmatpush2.bf16.msra.mxu0 0
        %790 = vmatprep.subr.bf16.mxu0 0
        %791 = vmatpush2.bf16.msra.mxu0 0
        %792 = vmatprep.subr.bf16.mxu0 0
        %793 = vmatpush2.bf16.msra.mxu0 0
        %794 = vmatprep.subr.bf16.mxu0 0
        %795 = vmatpush2.bf16.msra.mxu0 0
        %796 = vmatprep.mubr.bf16.mxu0 0
        %797 = vmatmul.mubr.bf16.gmra.mxu0 %v620
        %v798 = vpop.f32.mrf.mxu0
        %v799 = vadd.f32 0.0, %v798
        %v800 = vpop.f32.mrf.mxu0
        %v801 = vadd.f32 0.0, %v800
        %v802 = vpop.f32.mrf.mxu0
        %v803 = vadd.f32 0.0, %v802
        %v804 = vpop.f32.mrf.mxu0
        %v805 = vadd.f32 0.0, %v804
        %806 = vmatprep.mubr.bf16.mxu0 0
        %807 = vmatmul.mubr.bf16.gmra.mxu0 %v621
        %v808 = vpop.f32.mrf.mxu0
        %v809 = vadd.f32 0.0, %v808
        %v810 = vpop.f32.mrf.mxu0
        %v811 = vadd.f32 0.0, %v810
        %v812 = vpop.f32.mrf.mxu0
        %v813 = vadd.f32 0.0, %v812
        %v814 = vpop.f32.mrf.mxu0
        %v815 = vadd.f32 0.0, %v814
        %816 = vmatprep.mubr.bf16.mxu0 0
        %817 = vmatmul.mubr.bf16.gmra.mxu0 %v622
        %v818 = vpop.f32.mrf.mxu0
        %v819 = vadd.f32 0.0, %v818
        %v820 = vpop.f32.mrf.mxu0
        %v821 = vadd.f32 0.0, %v820
        %v822 = vpop.f32.mrf.mxu0
        %v823 = vadd.f32 0.0, %v822
        %v824 = vpop.f32.mrf.mxu0
        %v825 = vadd.f32 0.0, %v824
        %826 = vmatprep.mubr.bf16.mxu0 0
        %827 = vmatmul.mubr.bf16.gmra.mxu0 %v623
        %v828 = vpop.f32.mrf.mxu0
        %v829 = vadd.f32 0.0, %v828
        %v830 = vpop.f32.mrf.mxu0
        %v831 = vadd.f32 0.0, %v830
        %v832 = vpop.f32.mrf.mxu0
        %v833 = vadd.f32 0.0, %v832
        %v834 = vpop.f32.mrf.mxu0
        %v835 = vadd.f32 0.0, %v834
        %836 = vmatprep.mubr.bf16.mxu0 0
        %837 = vmatmul.mubr.bf16.gmra.mxu0 %v624
        %v838 = vpop.f32.mrf.mxu0
        %v839 = vadd.f32 0.0, %v838
        %v840 = vpop.f32.mrf.mxu0
        %v841 = vadd.f32 0.0, %v840
        %v842 = vpop.f32.mrf.mxu0
        %v843 = vadd.f32 0.0, %v842
        %v844 = vpop.f32.mrf.mxu0
        %v845 = vadd.f32 0.0, %v844
        %846 = vmatprep.mubr.bf16.mxu0 0
        %847 = vmatmul.mubr.bf16.gmra.mxu0 %v625
        %v848 = vpop.f32.mrf.mxu0
        %v849 = vadd.f32 0.0, %v848
        %v850 = vpop.f32.mrf.mxu0
        %v851 = vadd.f32 0.0, %v850
        %v852 = vpop.f32.mrf.mxu0
        %v853 = vadd.f32 0.0, %v852
        %v854 = vpop.f32.mrf.mxu0
        %v855 = vadd.f32 0.0, %v854
        %856 = vmatprep.mubr.bf16.mxu0 0
        %857 = vmatmul.mubr.bf16.gmra.mxu0 %v626
        %v858 = vpop.f32.mrf.mxu0
        %v859 = vadd.f32 0.0, %v858
        %v860 = vpop.f32.mrf.mxu0
        %v861 = vadd.f32 0.0, %v860
        %v862 = vpop.f32.mrf.mxu0
        %v863 = vadd.f32 0.0, %v862
        %v864 = vpop.f32.mrf.mxu0
        %v865 = vadd.f32 0.0, %v864
        %866 = vmatprep.mubr.bf16.mxu0 0
        %867 = vmatmul.mubr.bf16.gmra.mxu0 %v627
        %v868 = vpop.f32.mrf.mxu0
        %v869 = vadd.f32 0.0, %v868
        %v870 = vpop.f32.mrf.mxu0
        %v871 = vadd.f32 0.0, %v870
        %v872 = vpop.f32.mrf.mxu0
        %v873 = vadd.f32 0.0, %v872
        %v874 = vpop.f32.mrf.mxu0
        %v875 = vadd.f32 0.0, %v874
        %876 = vdwg.mxu0
        %v893 = vunpack.c.l.b16 %v652
        %v894 = vunpack.c.h.b16 %v652
        %v895 = vunpack.c.l.b16 %v653
        %v896 = vunpack.c.h.b16 %v653
        %v897 = vunpack.c.l.b16 %v654
        %v898 = vunpack.c.h.b16 %v654
        %v899 = vunpack.c.l.b16 %v655
        %v900 = vunpack.c.h.b16 %v655
        %v901 = vunpack.c.l.b16 %v656
        %v902 = vunpack.c.h.b16 %v656
        %v903 = vunpack.c.l.b16 %v657
        %v904 = vunpack.c.h.b16 %v657
        %v905 = vunpack.c.l.b16 %v658
        %v906 = vunpack.c.h.b16 %v658
        %v907 = vunpack.c.l.b16 %v659
        %v908 = vunpack.c.h.b16 %v659
        %v909 = vunpack.c.l.b16 %v660
        %v910 = vunpack.c.h.b16 %v660
        %v911 = vunpack.c.l.b16 %v661
        %v912 = vunpack.c.h.b16 %v661
        %v913 = vunpack.c.l.b16 %v662
        %v914 = vunpack.c.h.b16 %v662
        %v915 = vunpack.c.l.b16 %v663
        %v916 = vunpack.c.h.b16 %v663
        %v917 = vunpack.c.l.b16 %v664
        %v918 = vunpack.c.h.b16 %v664
        %v919 = vunpack.c.l.b16 %v665
        %v920 = vunpack.c.h.b16 %v665
        %v921 = vunpack.c.l.b16 %v666
        %v922 = vunpack.c.h.b16 %v666
        %v923 = vunpack.c.l.b16 %v667
        %v924 = vunpack.c.h.b16 %v667
        %v925 = vpack.c.b16 %v895, %v893
        %v926 = vpack.c.b16 %v896, %v894
        %v927 = vpack.c.b16 %v899, %v897
        %v928 = vpack.c.b16 %v900, %v898
        %v929 = vpack.c.b16 %v903, %v901
        %v930 = vpack.c.b16 %v904, %v902
        %v931 = vpack.c.b16 %v907, %v905
        %v932 = vpack.c.b16 %v908, %v906
        %v933 = vpack.c.b16 %v911, %v909
        %v934 = vpack.c.b16 %v912, %v910
        %v935 = vpack.c.b16 %v915, %v913
        %v936 = vpack.c.b16 %v916, %v914
        %v937 = vpack.c.b16 %v919, %v917
        %v938 = vpack.c.b16 %v920, %v918
        %v939 = vpack.c.b16 %v923, %v921
        %v940 = vpack.c.b16 %v924, %v922
        %957 = vmatprep.subr.bf16.mxu0 %v940
        %958 = vmatpush1.bf16.msra.mxu0 %v939
        %959 = vmatprep.subr.bf16.mxu0 %v938
        %960 = vmatpush1.bf16.msra.mxu0 %v937
        %961 = vmatprep.subr.bf16.mxu0 %v936
        %962 = vmatpush1.bf16.msra.mxu0 %v935
        %963 = vmatprep.subr.bf16.mxu0 %v934
        %964 = vmatpush1.bf16.msra.mxu0 %v933
        %965 = vmatprep.subr.bf16.mxu0 %v932
        %966 = vmatpush1.bf16.msra.mxu0 %v931
        %967 = vmatprep.subr.bf16.mxu0 %v930
        %968 = vmatpush1.bf16.msra.mxu0 %v929
        %969 = vmatprep.subr.bf16.mxu0 %v928
        %970 = vmatpush1.bf16.msra.mxu0 %v927
        %971 = vmatprep.subr.bf16.mxu0 %v926
        %972 = vmatpush1.bf16.msra.mxu0 %v925
        %973 = vmatprep.subr.bf16.mxu0 0
        %974 = vmatpush2.bf16.msra.mxu0 0
        %975 = vmatprep.subr.bf16.mxu0 0
        %976 = vmatpush2.bf16.msra.mxu0 0
        %977 = vmatprep.subr.bf16.mxu0 0
        %978 = vmatpush2.bf16.msra.mxu0 0
        %979 = vmatprep.subr.bf16.mxu0 0
        %980 = vmatpush2.bf16.msra.mxu0 0
        %981 = vmatprep.subr.bf16.mxu0 0
        %982 = vmatpush2.bf16.msra.mxu0 0
        %983 = vmatprep.subr.bf16.mxu0 0
        %984 = vmatpush2.bf16.msra.mxu0 0
        %985 = vmatprep.subr.bf16.mxu0 0
        %986 = vmatpush2.bf16.msra.mxu0 0
        %987 = vmatprep.subr.bf16.mxu0 0
        %988 = vmatpush2.bf16.msra.mxu0 0
        %989 = vmatprep.mubr.bf16.mxu0 0
        %990 = vmatmul.mubr.bf16.gmra.mxu0 %v596
        %v991 = vpop.f32.mrf.mxu0
        %v992 = vadd.f32 %v799, %v991
        %v993 = vpop.f32.mrf.mxu0
        %v994 = vadd.f32 %v801, %v993
        %v995 = vpop.f32.mrf.mxu0
        %v996 = vadd.f32 %v803, %v995
        %v997 = vpop.f32.mrf.mxu0
        %v998 = vadd.f32 %v805, %v997
        %999 = vmatprep.mubr.bf16.mxu0 0
        %1000 = vmatmul.mubr.bf16.gmra.mxu0 %v597
        %v1001 = vpop.f32.mrf.mxu0
        %v1002 = vadd.f32 %v809, %v1001
        %v1003 = vpop.f32.mrf.mxu0
        %v1004 = vadd.f32 %v811, %v1003
        %v1005 = vpop.f32.mrf.mxu0
        %v1006 = vadd.f32 %v813, %v1005
        %v1007 = vpop.f32.mrf.mxu0
        %v1008 = vadd.f32 %v815, %v1007
        %1009 = vmatprep.mubr.bf16.mxu0 0
        %1010 = vmatmul.mubr.bf16.gmra.mxu0 %v598
        %v1011 = vpop.f32.mrf.mxu0
        %v1012 = vadd.f32 %v819, %v1011
        %v1013 = vpop.f32.mrf.mxu0
        %v1014 = vadd.f32 %v821, %v1013
        %v1015 = vpop.f32.mrf.mxu0
        %v1016 = vadd.f32 %v823, %v1015
        %v1017 = vpop.f32.mrf.mxu0
        %v1018 = vadd.f32 %v825, %v1017
        %1019 = vmatprep.mubr.bf16.mxu0 0
        %1020 = vmatmul.mubr.bf16.gmra.mxu0 %v599
        %v1021 = vpop.f32.mrf.mxu0
        %v1022 = vadd.f32 %v829, %v1021
        %v1023 = vpop.f32.mrf.mxu0
        %v1024 = vadd.f32 %v831, %v1023
        %v1025 = vpop.f32.mrf.mxu0
        %v1026 = vadd.f32 %v833, %v1025
        %v1027 = vpop.f32.mrf.mxu0
        %v1028 = vadd.f32 %v835, %v1027
        %1029 = vmatprep.mubr.bf16.mxu0 0
        %1030 = vmatmul.mubr.bf16.gmra.mxu0 %v600
        %v1031 = vpop.f32.mrf.mxu0
        %v1032 = vadd.f32 %v839, %v1031
        %v1033 = vpop.f32.mrf.mxu0
        %v1034 = vadd.f32 %v841, %v1033
        %v1035 = vpop.f32.mrf.mxu0
        %v1036 = vadd.f32 %v843, %v1035
        %v1037 = vpop.f32.mrf.mxu0
        %v1038 = vadd.f32 %v845, %v1037
        %1039 = vmatprep.mubr.bf16.mxu0 0
        %1040 = vmatmul.mubr.bf16.gmra.mxu0 %v601
        %v1041 = vpop.f32.mrf.mxu0
        %v1042 = vadd.f32 %v849, %v1041
        %v1043 = vpop.f32.mrf.mxu0
        %v1044 = vadd.f32 %v851, %v1043
        %v1045 = vpop.f32.mrf.mxu0
        %v1046 = vadd.f32 %v853, %v1045
        %v1047 = vpop.f32.mrf.mxu0
        %v1048 = vadd.f32 %v855, %v1047
        %1049 = vmatprep.mubr.bf16.mxu0 0
        %1050 = vmatmul.mubr.bf16.gmra.mxu0 %v602
        %v1051 = vpop.f32.mrf.mxu0
        %v1052 = vadd.f32 %v859, %v1051
        %v1053 = vpop.f32.mrf.mxu0
        %v1054 = vadd.f32 %v861, %v1053
        %v1055 = vpop.f32.mrf.mxu0
        %v1056 = vadd.f32 %v863, %v1055
        %v1057 = vpop.f32.mrf.mxu0
        %v1058 = vadd.f32 %v865, %v1057
        %1059 = vmatprep.mubr.bf16.mxu0 0
        %1060 = vmatmul.mubr.bf16.gmra.mxu0 %v603
        %v1061 = vpop.f32.mrf.mxu0
        %v1062 = vadd.f32 %v869, %v1061
        %v1063 = vpop.f32.mrf.mxu0
        %v1064 = vadd.f32 %v871, %v1063
        %v1065 = vpop.f32.mrf.mxu0
        %v1066 = vadd.f32 %v873, %v1065
        %v1067 = vpop.f32.mrf.mxu0
        %v1068 = vadd.f32 %v875, %v1067
        %1069 = vdwg.mxu0
        %v1070 = vld [vmem:[%s5] sm:$0x3]
        %v1072 = vlaneseq
        %v1073 = vshrl.u32 %v1072, 7
        %v1074 = vsub.s32 0, %v1073
        %v1075 = vrot.slane %v1070, %v1074
        %v1076 = vlaneseq
        %v1077 = vshrl.u32 %v1076, 7
        %v1078 = vsub.s32 1, %v1077
        %v1079 = vrot.slane %v1070, %v1078
        %v1082 = vadd.f32 %v992, %v1075
        %v1083 = vadd.f32 %v994, %v1079
        %v1084 = vadd.f32 %v996, %v1075
        %v1085 = vadd.f32 %v998, %v1079
        %v1086 = vadd.f32 %v1002, %v1075
        %v1087 = vadd.f32 %v1004, %v1079
        %v1088 = vadd.f32 %v1006, %v1075
        %v1089 = vadd.f32 %v1008, %v1079
        %v1090 = vadd.f32 %v1012, %v1075
        %v1091 = vadd.f32 %v1014, %v1079
        %v1092 = vadd.f32 %v1016, %v1075
        %v1093 = vadd.f32 %v1018, %v1079
        %v1094 = vadd.f32 %v1022, %v1075
        %v1095 = vadd.f32 %v1024, %v1079
        %v1096 = vadd.f32 %v1026, %v1075
        %v1097 = vadd.f32 %v1028, %v1079
        %v1098 = vadd.f32 %v1032, %v1075
        %v1099 = vadd.f32 %v1034, %v1079
        %v1100 = vadd.f32 %v1036, %v1075
        %v1101 = vadd.f32 %v1038, %v1079
        %v1102 = vadd.f32 %v1042, %v1075
        %v1103 = vadd.f32 %v1044, %v1079
        %v1104 = vadd.f32 %v1046, %v1075
        %v1105 = vadd.f32 %v1048, %v1079
        %v1106 = vadd.f32 %v1052, %v1075
        %v1107 = vadd.f32 %v1054, %v1079
        %v1108 = vadd.f32 %v1056, %v1075
        %v1109 = vadd.f32 %v1058, %v1079
        %v1110 = vadd.f32 %v1062, %v1075
        %v1111 = vadd.f32 %v1064, %v1079
        %v1112 = vadd.f32 %v1066, %v1075
        %v1113 = vadd.f32 %v1068, %v1079
        %v1114 = vld [vmem:[%s6] sm:$0x3]
        %v1115 = vld [vmem:[%s7] sm:$0x3]
        %v1116 = vadd.f32 %v1082, %v1083
        %1117 = vadd.xlane.f32.xlu0 %v1116
        %v1118 = vpop.xlane.xlu0 %1117
        %v1119 = vadd.f32 %v1084, %v1085
        %1120 = vadd.xlane.f32.xlu0 %v1119
        %v1121 = vpop.xlane.xlu0 %1120
        %v1122 = vadd.f32 %v1086, %v1087
        %1123 = vadd.xlane.f32.xlu0 %v1122
        %v1124 = vpop.xlane.xlu0 %1123
        %v1125 = vadd.f32 %v1088, %v1089
        %1126 = vadd.xlane.f32.xlu0 %v1125
        %v1127 = vpop.xlane.xlu0 %1126
        %v1128 = vadd.f32 %v1090, %v1091
        %1129 = vadd.xlane.f32.xlu0 %v1128
        %v1130 = vpop.xlane.xlu0 %1129
        %v1131 = vadd.f32 %v1092, %v1093
        %1132 = vadd.xlane.f32.xlu0 %v1131
        %v1133 = vpop.xlane.xlu0 %1132
        %v1134 = vadd.f32 %v1094, %v1095
        %1135 = vadd.xlane.f32.xlu0 %v1134
        %v1136 = vpop.xlane.xlu0 %1135
        %v1137 = vadd.f32 %v1096, %v1097
        %1138 = vadd.xlane.f32.xlu0 %v1137
        %v1139 = vpop.xlane.xlu0 %1138
        %v1140 = vadd.f32 %v1098, %v1099
        %1141 = vadd.xlane.f32.xlu0 %v1140
        %v1142 = vpop.xlane.xlu0 %1141
        %v1143 = vadd.f32 %v1100, %v1101
        %1144 = vadd.xlane.f32.xlu0 %v1143
        %v1145 = vpop.xlane.xlu0 %1144
        %v1146 = vadd.f32 %v1102, %v1103
        %1147 = vadd.xlane.f32.xlu0 %v1146
        %v1148 = vpop.xlane.xlu0 %1147
        %v1149 = vadd.f32 %v1104, %v1105
        %1150 = vadd.xlane.f32.xlu0 %v1149
        %v1151 = vpop.xlane.xlu0 %1150
        %v1152 = vadd.f32 %v1106, %v1107
        %1153 = vadd.xlane.f32.xlu0 %v1152
        %v1154 = vpop.xlane.xlu0 %1153
        %v1155 = vadd.f32 %v1108, %v1109
        %1156 = vadd.xlane.f32.xlu0 %v1155
        %v1157 = vpop.xlane.xlu0 %1156
        %v1158 = vadd.f32 %v1110, %v1111
        %1159 = vadd.xlane.f32.xlu0 %v1158
        %v1160 = vpop.xlane.xlu0 %1159
        %v1161 = vadd.f32 %v1112, %v1113
        %1162 = vadd.xlane.f32.xlu0 %v1161
        %v1163 = vpop.xlane.xlu0 %1162
        %v1164 = vrcp.pop 256.0
        %v1165 = vmul.f32 %v1118, %v1164
        %v1166 = vmul.f32 %v1121, %v1164
        %v1167 = vmul.f32 %v1124, %v1164
        %v1168 = vmul.f32 %v1127, %v1164
        %v1169 = vmul.f32 %v1130, %v1164
        %v1170 = vmul.f32 %v1133, %v1164
        %v1171 = vmul.f32 %v1136, %v1164
        %v1172 = vmul.f32 %v1139, %v1164
        %v1173 = vmul.f32 %v1142, %v1164
        %v1174 = vmul.f32 %v1145, %v1164
        %v1175 = vmul.f32 %v1148, %v1164
        %v1176 = vmul.f32 %v1151, %v1164
        %v1177 = vmul.f32 %v1154, %v1164
        %v1178 = vmul.f32 %v1157, %v1164
        %v1179 = vmul.f32 %v1160, %v1164
        %v1180 = vmul.f32 %v1163, %v1164
        %v1181 = vmul.f32 %v1082, %v1082
        %v1182 = vmul.f32 %v1083, %v1083
        %v1183 = vmul.f32 %v1084, %v1084
        %v1184 = vmul.f32 %v1085, %v1085
        %v1185 = vmul.f32 %v1086, %v1086
        %v1186 = vmul.f32 %v1087, %v1087
        %v1187 = vmul.f32 %v1088, %v1088
        %v1188 = vmul.f32 %v1089, %v1089
        %v1189 = vmul.f32 %v1090, %v1090
        %v1190 = vmul.f32 %v1091, %v1091
        %v1191 = vmul.f32 %v1092, %v1092
        %v1192 = vmul.f32 %v1093, %v1093
        %v1193 = vmul.f32 %v1094, %v1094
        %v1194 = vmul.f32 %v1095, %v1095
        %v1195 = vmul.f32 %v1096, %v1096
        %v1196 = vmul.f32 %v1097, %v1097
        %v1197 = vmul.f32 %v1098, %v1098
        %v1198 = vmul.f32 %v1099, %v1099
        %v1199 = vmul.f32 %v1100, %v1100
        %v1200 = vmul.f32 %v1101, %v1101
        %v1201 = vmul.f32 %v1102, %v1102
        %v1202 = vmul.f32 %v1103, %v1103
        %v1203 = vmul.f32 %v1104, %v1104
        %v1204 = vmul.f32 %v1105, %v1105
        %v1205 = vmul.f32 %v1106, %v1106
        %v1206 = vmul.f32 %v1107, %v1107
        %v1207 = vmul.f32 %v1108, %v1108
        %v1208 = vmul.f32 %v1109, %v1109
        %v1209 = vmul.f32 %v1110, %v1110
        %v1210 = vmul.f32 %v1111, %v1111
        %v1211 = vmul.f32 %v1112, %v1112
        %v1212 = vmul.f32 %v1113, %v1113
        %v1213 = vadd.f32 %v1181, %v1182
        %1214 = vadd.xlane.f32.xlu0 %v1213
        %v1215 = vpop.xlane.xlu0 %1214
        %v1216 = vadd.f32 %v1183, %v1184
        %1217 = vadd.xlane.f32.xlu0 %v1216
        %v1218 = vpop.xlane.xlu0 %1217
        %v1219 = vadd.f32 %v1185, %v1186
        %1220 = vadd.xlane.f32.xlu0 %v1219
        %v1221 = vpop.xlane.xlu0 %1220
        %v1222 = vadd.f32 %v1187, %v1188
        %1223 = vadd.xlane.f32.xlu0 %v1222
        %v1224 = vpop.xlane.xlu0 %1223
        %v1225 = vadd.f32 %v1189, %v1190
        %1226 = vadd.xlane.f32.xlu0 %v1225
        %v1227 = vpop.xlane.xlu0 %1226
        %v1228 = vadd.f32 %v1191, %v1192
        %1229 = vadd.xlane.f32.xlu0 %v1228
        %v1230 = vpop.xlane.xlu0 %1229
        %v1231 = vadd.f32 %v1193, %v1194
        %1232 = vadd.xlane.f32.xlu0 %v1231
        %v1233 = vpop.xlane.xlu0 %1232
        %v1234 = vadd.f32 %v1195, %v1196
        %1235 = vadd.xlane.f32.xlu0 %v1234
        %v1236 = vpop.xlane.xlu0 %1235
        %v1237 = vadd.f32 %v1197, %v1198
        %1238 = vadd.xlane.f32.xlu0 %v1237
        %v1239 = vpop.xlane.xlu0 %1238
        %v1240 = vadd.f32 %v1199, %v1200
        %1241 = vadd.xlane.f32.xlu0 %v1240
        %v1242 = vpop.xlane.xlu0 %1241
        %v1243 = vadd.f32 %v1201, %v1202
        %1244 = vadd.xlane.f32.xlu0 %v1243
        %v1245 = vpop.xlane.xlu0 %1244
        %v1246 = vadd.f32 %v1203, %v1204
        %1247 = vadd.xlane.f32.xlu0 %v1246
        %v1248 = vpop.xlane.xlu0 %1247
        %v1249 = vadd.f32 %v1205, %v1206
        %1250 = vadd.xlane.f32.xlu0 %v1249
        %v1251 = vpop.xlane.xlu0 %1250
        %v1252 = vadd.f32 %v1207, %v1208
        %1253 = vadd.xlane.f32.xlu0 %v1252
        %v1254 = vpop.xlane.xlu0 %1253
        %v1255 = vadd.f32 %v1209, %v1210
        %1256 = vadd.xlane.f32.xlu0 %v1255
        %v1257 = vpop.xlane.xlu0 %1256
        %v1258 = vadd.f32 %v1211, %v1212
        %1259 = vadd.xlane.f32.xlu0 %v1258
        %v1260 = vpop.xlane.xlu0 %1259
        %v1261 = vmul.f32 %v1215, %v1164
        %v1262 = vmul.f32 %v1218, %v1164
        %v1263 = vmul.f32 %v1221, %v1164
        %v1264 = vmul.f32 %v1224, %v1164
        %v1265 = vmul.f32 %v1227, %v1164
        %v1266 = vmul.f32 %v1230, %v1164
        %v1267 = vmul.f32 %v1233, %v1164
        %v1268 = vmul.f32 %v1236, %v1164
        %v1269 = vmul.f32 %v1239, %v1164
        %v1270 = vmul.f32 %v1242, %v1164
        %v1271 = vmul.f32 %v1245, %v1164
        %v1272 = vmul.f32 %v1248, %v1164
        %v1273 = vmul.f32 %v1251, %v1164
        %v1274 = vmul.f32 %v1254, %v1164
        %v1275 = vmul.f32 %v1257, %v1164
        %v1276 = vmul.f32 %v1260, %v1164
        %v1277 = vmul.f32 %v1165, %v1165
        %v1278 = vmul.f32 %v1166, %v1166
        %v1279 = vmul.f32 %v1167, %v1167
        %v1280 = vmul.f32 %v1168, %v1168
        %v1281 = vmul.f32 %v1169, %v1169
        %v1282 = vmul.f32 %v1170, %v1170
        %v1283 = vmul.f32 %v1171, %v1171
        %v1284 = vmul.f32 %v1172, %v1172
        %v1285 = vmul.f32 %v1173, %v1173
        %v1286 = vmul.f32 %v1174, %v1174
        %v1287 = vmul.f32 %v1175, %v1175
        %v1288 = vmul.f32 %v1176, %v1176
        %v1289 = vmul.f32 %v1177, %v1177
        %v1290 = vmul.f32 %v1178, %v1178
        %v1291 = vmul.f32 %v1179, %v1179
        %v1292 = vmul.f32 %v1180, %v1180
        %v1293 = vsub.f32 %v1261, %v1277
        %v1294 = vsub.f32 %v1262, %v1278
        %v1295 = vsub.f32 %v1263, %v1279
        %v1296 = vsub.f32 %v1264, %v1280
        %v1297 = vsub.f32 %v1265, %v1281
        %v1298 = vsub.f32 %v1266, %v1282
        %v1299 = vsub.f32 %v1267, %v1283
        %v1300 = vsub.f32 %v1268, %v1284
        %v1301 = vsub.f32 %v1269, %v1285
        %v1302 = vsub.f32 %v1270, %v1286
        %v1303 = vsub.f32 %v1271, %v1287
        %v1304 = vsub.f32 %v1272, %v1288
        %v1305 = vsub.f32 %v1273, %v1289
        %v1306 = vsub.f32 %v1274, %v1290
        %v1307 = vsub.f32 %v1275, %v1291
        %v1308 = vsub.f32 %v1276, %v1292
        %v1309 = vsub.f32 %v1082, %v1165
        %v1310 = vsub.f32 %v1083, %v1165
        %v1311 = vsub.f32 %v1084, %v1166
        %v1312 = vsub.f32 %v1085, %v1166
        %v1313 = vsub.f32 %v1086, %v1167
        %v1314 = vsub.f32 %v1087, %v1167
        %v1315 = vsub.f32 %v1088, %v1168
        %v1316 = vsub.f32 %v1089, %v1168
        %v1317 = vsub.f32 %v1090, %v1169
        %v1318 = vsub.f32 %v1091, %v1169
        %v1319 = vsub.f32 %v1092, %v1170
        %v1320 = vsub.f32 %v1093, %v1170
        %v1321 = vsub.f32 %v1094, %v1171
        %v1322 = vsub.f32 %v1095, %v1171
        %v1323 = vsub.f32 %v1096, %v1172
        %v1324 = vsub.f32 %v1097, %v1172
        %v1325 = vsub.f32 %v1098, %v1173
        %v1326 = vsub.f32 %v1099, %v1173
        %v1327 = vsub.f32 %v1100, %v1174
        %v1328 = vsub.f32 %v1101, %v1174
        %v1329 = vsub.f32 %v1102, %v1175
        %v1330 = vsub.f32 %v1103, %v1175
        %v1331 = vsub.f32 %v1104, %v1176
        %v1332 = vsub.f32 %v1105, %v1176
        %v1333 = vsub.f32 %v1106, %v1177
        %v1334 = vsub.f32 %v1107, %v1177
        %v1335 = vsub.f32 %v1108, %v1178
        %v1336 = vsub.f32 %v1109, %v1178
        %v1337 = vsub.f32 %v1110, %v1179
        %v1338 = vsub.f32 %v1111, %v1179
        %v1339 = vsub.f32 %v1112, %v1180
        %v1340 = vsub.f32 %v1113, %v1180
        %v1341 = vadd.f32 %v1293, 1e-05
        %v1342 = vadd.f32 %v1294, 1e-05
        %v1343 = vadd.f32 %v1295, 1e-05
        %v1344 = vadd.f32 %v1296, 1e-05
        %v1345 = vadd.f32 %v1297, 1e-05
        %v1346 = vadd.f32 %v1298, 1e-05
        %v1347 = vadd.f32 %v1299, 1e-05
        %v1348 = vadd.f32 %v1300, 1e-05
        %v1349 = vadd.f32 %v1301, 1e-05
        %v1350 = vadd.f32 %v1302, 1e-05
        %v1351 = vadd.f32 %v1303, 1e-05
        %v1352 = vadd.f32 %v1304, 1e-05
        %v1353 = vadd.f32 %v1305, 1e-05
        %v1354 = vadd.f32 %v1306, 1e-05
        %v1355 = vadd.f32 %v1307, 1e-05
        %v1356 = vadd.f32 %v1308, 1e-05
        %v1357 = vrsqrt.pop %v1341
        %v1358 = vrsqrt.pop %v1342
        %v1359 = vrsqrt.pop %v1343
        %v1360 = vrsqrt.pop %v1344
        %v1361 = vrsqrt.pop %v1345
        %v1362 = vrsqrt.pop %v1346
        %v1363 = vrsqrt.pop %v1347
        %v1364 = vrsqrt.pop %v1348
        %v1365 = vrsqrt.pop %v1349
        %v1366 = vrsqrt.pop %v1350
        %v1367 = vrsqrt.pop %v1351
        %v1368 = vrsqrt.pop %v1352
        %v1369 = vrsqrt.pop %v1353
        %v1370 = vrsqrt.pop %v1354
        %v1371 = vrsqrt.pop %v1355
        %v1372 = vrsqrt.pop %v1356
        %v1373 = vmul.f32 %v1309, %v1357
        %v1374 = vmul.f32 %v1310, %v1357
        %v1375 = vmul.f32 %v1311, %v1358
        %v1376 = vmul.f32 %v1312, %v1358
        %v1377 = vmul.f32 %v1313, %v1359
        %v1378 = vmul.f32 %v1314, %v1359
        %v1379 = vmul.f32 %v1315, %v1360
        %v1380 = vmul.f32 %v1316, %v1360
        %v1381 = vmul.f32 %v1317, %v1361
        %v1382 = vmul.f32 %v1318, %v1361
        %v1383 = vmul.f32 %v1319, %v1362
        %v1384 = vmul.f32 %v1320, %v1362
        %v1385 = vmul.f32 %v1321, %v1363
        %v1386 = vmul.f32 %v1322, %v1363
        %v1387 = vmul.f32 %v1323, %v1364
        %v1388 = vmul.f32 %v1324, %v1364
        %v1389 = vmul.f32 %v1325, %v1365
        %v1390 = vmul.f32 %v1326, %v1365
        %v1391 = vmul.f32 %v1327, %v1366
        %v1392 = vmul.f32 %v1328, %v1366
        %v1393 = vmul.f32 %v1329, %v1367
        %v1394 = vmul.f32 %v1330, %v1367
        %v1395 = vmul.f32 %v1331, %v1368
        %v1396 = vmul.f32 %v1332, %v1368
        %v1397 = vmul.f32 %v1333, %v1369
        %v1398 = vmul.f32 %v1334, %v1369
        %v1399 = vmul.f32 %v1335, %v1370
        %v1400 = vmul.f32 %v1336, %v1370
        %v1401 = vmul.f32 %v1337, %v1371
        %v1402 = vmul.f32 %v1338, %v1371
        %v1403 = vmul.f32 %v1339, %v1372
        %v1404 = vmul.f32 %v1340, %v1372
        %v1406 = vlaneseq
        %v1407 = vshrl.u32 %v1406, 7
        %v1408 = vsub.s32 0, %v1407
        %v1409 = vrot.slane %v1114, %v1408
        %v1410 = vlaneseq
        %v1411 = vshrl.u32 %v1410, 7
        %v1412 = vsub.s32 1, %v1411
        %v1413 = vrot.slane %v1114, %v1412
        %v1416 = vmul.f32 %v1373, %v1409
        %v1417 = vmul.f32 %v1374, %v1413
        %v1418 = vmul.f32 %v1375, %v1409
        %v1419 = vmul.f32 %v1376, %v1413
        %v1420 = vmul.f32 %v1377, %v1409
        %v1421 = vmul.f32 %v1378, %v1413
        %v1422 = vmul.f32 %v1379, %v1409
        %v1423 = vmul.f32 %v1380, %v1413
        %v1424 = vmul.f32 %v1381, %v1409
        %v1425 = vmul.f32 %v1382, %v1413
        %v1426 = vmul.f32 %v1383, %v1409
        %v1427 = vmul.f32 %v1384, %v1413
        %v1428 = vmul.f32 %v1385, %v1409
        %v1429 = vmul.f32 %v1386, %v1413
        %v1430 = vmul.f32 %v1387, %v1409
        %v1431 = vmul.f32 %v1388, %v1413
        %v1432 = vmul.f32 %v1389, %v1409
        %v1433 = vmul.f32 %v1390, %v1413
        %v1434 = vmul.f32 %v1391, %v1409
        %v1435 = vmul.f32 %v1392, %v1413
        %v1436 = vmul.f32 %v1393, %v1409
        %v1437 = vmul.f32 %v1394, %v1413
        %v1438 = vmul.f32 %v1395, %v1409
        %v1439 = vmul.f32 %v1396, %v1413
        %v1440 = vmul.f32 %v1397, %v1409
        %v1441 = vmul.f32 %v1398, %v1413
        %v1442 = vmul.f32 %v1399, %v1409
        %v1443 = vmul.f32 %v1400, %v1413
        %v1444 = vmul.f32 %v1401, %v1409
        %v1445 = vmul.f32 %v1402, %v1413
        %v1446 = vmul.f32 %v1403, %v1409
        %v1447 = vmul.f32 %v1404, %v1413
        %v1449 = vlaneseq
        %v1450 = vshrl.u32 %v1449, 7
        %v1451 = vsub.s32 0, %v1450
        %v1452 = vrot.slane %v1115, %v1451
        %v1453 = vlaneseq
        %v1454 = vshrl.u32 %v1453, 7
        %v1455 = vsub.s32 1, %v1454
        %v1456 = vrot.slane %v1115, %v1455
        %v1459 = vadd.f32 %v1416, %v1452
        %v1460 = vadd.f32 %v1417, %v1456
        %v1461 = vadd.f32 %v1418, %v1452
        %v1462 = vadd.f32 %v1419, %v1456
        %v1463 = vadd.f32 %v1420, %v1452
        %v1464 = vadd.f32 %v1421, %v1456
        %v1465 = vadd.f32 %v1422, %v1452
        %v1466 = vadd.f32 %v1423, %v1456
        %v1467 = vadd.f32 %v1424, %v1452
        %v1468 = vadd.f32 %v1425, %v1456
        %v1469 = vadd.f32 %v1426, %v1452
        %v1470 = vadd.f32 %v1427, %v1456
        %v1471 = vadd.f32 %v1428, %v1452
        %v1472 = vadd.f32 %v1429, %v1456
        %v1473 = vadd.f32 %v1430, %v1452
        %v1474 = vadd.f32 %v1431, %v1456
        %v1475 = vadd.f32 %v1432, %v1452
        %v1476 = vadd.f32 %v1433, %v1456
        %v1477 = vadd.f32 %v1434, %v1452
        %v1478 = vadd.f32 %v1435, %v1456
        %v1479 = vadd.f32 %v1436, %v1452
        %v1480 = vadd.f32 %v1437, %v1456
        %v1481 = vadd.f32 %v1438, %v1452
        %v1482 = vadd.f32 %v1439, %v1456
        %v1483 = vadd.f32 %v1440, %v1452
        %v1484 = vadd.f32 %v1441, %v1456
        %v1485 = vadd.f32 %v1442, %v1452
        %v1486 = vadd.f32 %v1443, %v1456
        %v1487 = vadd.f32 %v1444, %v1452
        %v1488 = vadd.f32 %v1445, %v1456
        %v1489 = vadd.f32 %v1446, %v1452
        %v1490 = vadd.f32 %v1447, %v1456
        %v1491 = vmax.f32 %v1459, 0.0
        %v1492 = vmax.f32 %v1460, 0.0
        %v1493 = vmax.f32 %v1461, 0.0
        %v1494 = vmax.f32 %v1462, 0.0
        %v1495 = vmax.f32 %v1463, 0.0
        %v1496 = vmax.f32 %v1464, 0.0
        %v1497 = vmax.f32 %v1465, 0.0
        %v1498 = vmax.f32 %v1466, 0.0
        %v1499 = vmax.f32 %v1467, 0.0
        %v1500 = vmax.f32 %v1468, 0.0
        %v1501 = vmax.f32 %v1469, 0.0
        %v1502 = vmax.f32 %v1470, 0.0
        %v1503 = vmax.f32 %v1471, 0.0
        %v1504 = vmax.f32 %v1472, 0.0
        %v1505 = vmax.f32 %v1473, 0.0
        %v1506 = vmax.f32 %v1474, 0.0
        %v1507 = vmax.f32 %v1475, 0.0
        %v1508 = vmax.f32 %v1476, 0.0
        %v1509 = vmax.f32 %v1477, 0.0
        %v1510 = vmax.f32 %v1478, 0.0
        %v1511 = vmax.f32 %v1479, 0.0
        %v1512 = vmax.f32 %v1480, 0.0
        %v1513 = vmax.f32 %v1481, 0.0
        %v1514 = vmax.f32 %v1482, 0.0
        %v1515 = vmax.f32 %v1483, 0.0
        %v1516 = vmax.f32 %v1484, 0.0
        %v1517 = vmax.f32 %v1485, 0.0
        %v1518 = vmax.f32 %v1486, 0.0
        %v1519 = vmax.f32 %v1487, 0.0
        %v1520 = vmax.f32 %v1488, 0.0
        %v1521 = vmax.f32 %v1489, 0.0
        %v1522 = vmax.f32 %v1490, 0.0
        %v1523 = vpack.c.bf16 %v1493, %v1491
        %v1524 = vpack.c.bf16 %v1494, %v1492
        %v1525 = vpack.c.bf16 %v1497, %v1495
        %v1526 = vpack.c.bf16 %v1498, %v1496
        %v1527 = vpack.c.bf16 %v1501, %v1499
        %v1528 = vpack.c.bf16 %v1502, %v1500
        %v1529 = vpack.c.bf16 %v1505, %v1503
        %v1530 = vpack.c.bf16 %v1506, %v1504
        %v1531 = vpack.c.bf16 %v1509, %v1507
        %v1532 = vpack.c.bf16 %v1510, %v1508
        %v1533 = vpack.c.bf16 %v1513, %v1511
        %v1534 = vpack.c.bf16 %v1514, %v1512
        %v1535 = vpack.c.bf16 %v1517, %v1515
        %v1536 = vpack.c.bf16 %v1518, %v1516
        %v1537 = vpack.c.bf16 %v1521, %v1519
        %v1538 = vpack.c.bf16 %v1522, %v1520
        %v1539 = vld [vmem:[%s8] sm:$0xf]
        %v1540 = vld [vmem:[%s8 + $0x4] sm:$0xf]
        %v1541 = vld [vmem:[%s8 + $0x8] sm:$0xf]
        %v1542 = vld [vmem:[%s8 + $0xc] sm:$0xf]
        %v1543 = vld [vmem:[%s8 + $0x10] sm:$0xf]
        %v1544 = vld [vmem:[%s8 + $0x14] sm:$0xf]
        %v1545 = vld [vmem:[%s8 + $0x18] sm:$0xf]
        %v1546 = vld [vmem:[%s8 + $0x1c] sm:$0xf]
        %v1547 = vld [vmem:[%s8 + $0x20] sm:$0xf]
        %v1548 = vld [vmem:[%s8 + $0x24] sm:$0xf]
        %v1549 = vld [vmem:[%s8 + $0x28] sm:$0xf]
        %v1550 = vld [vmem:[%s8 + $0x2c] sm:$0xf]
        %v1551 = vld [vmem:[%s8 + $0x30] sm:$0xf]
        %v1552 = vld [vmem:[%s8 + $0x34] sm:$0xf]
        %v1553 = vld [vmem:[%s8 + $0x38] sm:$0xf]
        %v1554 = vld [vmem:[%s8 + $0x3c] sm:$0xf]
        %v1555 = vld [vmem:[%s8 + $0x40] sm:$0xf]
        %v1556 = vld [vmem:[%s8 + $0x44] sm:$0xf]
        %v1557 = vld [vmem:[%s8 + $0x48] sm:$0xf]
        %v1558 = vld [vmem:[%s8 + $0x4c] sm:$0xf]
        %v1559 = vld [vmem:[%s8 + $0x50] sm:$0xf]
        %v1560 = vld [vmem:[%s8 + $0x54] sm:$0xf]
        %v1561 = vld [vmem:[%s8 + $0x58] sm:$0xf]
        %v1562 = vld [vmem:[%s8 + $0x5c] sm:$0xf]
        %v1563 = vld [vmem:[%s8 + $0x60] sm:$0xf]
        %v1564 = vld [vmem:[%s8 + $0x64] sm:$0xf]
        %v1565 = vld [vmem:[%s8 + $0x68] sm:$0xf]
        %v1566 = vld [vmem:[%s8 + $0x6c] sm:$0xf]
        %v1567 = vld [vmem:[%s8 + $0x70] sm:$0xf]
        %v1568 = vld [vmem:[%s8 + $0x74] sm:$0xf]
        %v1569 = vld [vmem:[%s8 + $0x78] sm:$0xf]
        %v1570 = vld [vmem:[%s8 + $0x7c] sm:$0xf]
        %v1571 = vld [vmem:[%s9] sm:$0x1]
        %v1573 = vlaneseq
        %v1574 = vshrl.u32 %v1573, 7
        %v1575 = vsub.s32 0, %v1574
        %v1576 = vrot.slane %v1571, %v1575
        %v1610 = vunpack.c.l.b16 %v1539
        %v1611 = vunpack.c.l.b16 %v1540
        %v1612 = vunpack.c.l.b16 %v1541
        %v1613 = vunpack.c.l.b16 %v1542
        %v1614 = vunpack.c.l.b16 %v1543
        %v1615 = vunpack.c.l.b16 %v1544
        %v1616 = vunpack.c.l.b16 %v1545
        %v1617 = vunpack.c.l.b16 %v1546
        %v1618 = vunpack.c.l.b16 %v1547
        %v1619 = vunpack.c.l.b16 %v1548
        %v1620 = vunpack.c.l.b16 %v1549
        %v1621 = vunpack.c.l.b16 %v1550
        %v1622 = vunpack.c.l.b16 %v1551
        %v1623 = vunpack.c.l.b16 %v1552
        %v1624 = vunpack.c.l.b16 %v1553
        %v1625 = vunpack.c.l.b16 %v1554
        %v1626 = vunpack.c.l.b16 %v1555
        %v1627 = vunpack.c.l.b16 %v1556
        %v1628 = vunpack.c.l.b16 %v1557
        %v1629 = vunpack.c.l.b16 %v1558
        %v1630 = vunpack.c.l.b16 %v1559
        %v1631 = vunpack.c.l.b16 %v1560
        %v1632 = vunpack.c.l.b16 %v1561
        %v1633 = vunpack.c.l.b16 %v1562
        %v1634 = vunpack.c.l.b16 %v1563
        %v1635 = vunpack.c.l.b16 %v1564
        %v1636 = vunpack.c.l.b16 %v1565
        %v1637 = vunpack.c.l.b16 %v1566
        %v1638 = vunpack.c.l.b16 %v1567
        %v1639 = vunpack.c.l.b16 %v1568
        %v1640 = vunpack.c.l.b16 %v1569
        %v1641 = vunpack.c.l.b16 %v1570
        %v1642 = vpack.c.b16 %v1611, %v1610
        %v1643 = vpack.c.b16 %v1613, %v1612
        %v1644 = vpack.c.b16 %v1615, %v1614
        %v1645 = vpack.c.b16 %v1617, %v1616
        %v1646 = vpack.c.b16 %v1619, %v1618
        %v1647 = vpack.c.b16 %v1621, %v1620
        %v1648 = vpack.c.b16 %v1623, %v1622
        %v1649 = vpack.c.b16 %v1625, %v1624
        %v1650 = vpack.c.b16 %v1627, %v1626
        %v1651 = vpack.c.b16 %v1629, %v1628
        %v1652 = vpack.c.b16 %v1631, %v1630
        %v1653 = vpack.c.b16 %v1633, %v1632
        %v1654 = vpack.c.b16 %v1635, %v1634
        %v1655 = vpack.c.b16 %v1637, %v1636
        %v1656 = vpack.c.b16 %v1639, %v1638
        %v1657 = vpack.c.b16 %v1641, %v1640
        %1674 = vmatprep.subr.bf16.mxu0 0
        %1675 = vmatpush1.bf16.msra.mxu0 %v1649
        %1676 = vmatprep.subr.bf16.mxu0 0
        %1677 = vmatpush1.bf16.msra.mxu0 %v1648
        %1678 = vmatprep.subr.bf16.mxu0 0
        %1679 = vmatpush1.bf16.msra.mxu0 %v1647
        %1680 = vmatprep.subr.bf16.mxu0 0
        %1681 = vmatpush1.bf16.msra.mxu0 %v1646
        %1682 = vmatprep.subr.bf16.mxu0 0
        %1683 = vmatpush1.bf16.msra.mxu0 %v1645
        %1684 = vmatprep.subr.bf16.mxu0 0
        %1685 = vmatpush1.bf16.msra.mxu0 %v1644
        %1686 = vmatprep.subr.bf16.mxu0 0
        %1687 = vmatpush1.bf16.msra.mxu0 %v1643
        %1688 = vmatprep.subr.bf16.mxu0 0
        %1689 = vmatpush1.bf16.msra.mxu0 %v1642
        %1690 = vmatprep.subr.bf16.mxu0 0
        %1691 = vmatpush2.bf16.msra.mxu0 %v1657
        %1692 = vmatprep.subr.bf16.mxu0 0
        %1693 = vmatpush2.bf16.msra.mxu0 %v1656
        %1694 = vmatprep.subr.bf16.mxu0 0
        %1695 = vmatpush2.bf16.msra.mxu0 %v1655
        %1696 = vmatprep.subr.bf16.mxu0 0
        %1697 = vmatpush2.bf16.msra.mxu0 %v1654
        %1698 = vmatprep.subr.bf16.mxu0 0
        %1699 = vmatpush2.bf16.msra.mxu0 %v1653
        %1700 = vmatprep.subr.bf16.mxu0 0
        %1701 = vmatpush2.bf16.msra.mxu0 %v1652
        %1702 = vmatprep.subr.bf16.mxu0 0
        %1703 = vmatpush2.bf16.msra.mxu0 %v1651
        %1704 = vmatprep.subr.bf16.mxu0 0
        %1705 = vmatpush2.bf16.msra.mxu0 %v1650
        %1706 = vmatprep.mubr.bf16.mxu0 %v1524
        %1707 = vmatmul.mubr.bf16.gmra.mxu0 %v1523
        %v1708 = vpop.f32.mrf.mxu0
        %v1709 = vadd.f32 %v1576, %v1708
        %v1710 = vpop.f32.mrf.mxu0
        %v1711 = vpop.f32.mrf.mxu0
        %v1712 = vadd.f32 %v1576, %v1711
        %v1713 = vpop.f32.mrf.mxu0
        %1714 = vmatprep.mubr.bf16.mxu0 %v1526
        %1715 = vmatmul.mubr.bf16.gmra.mxu0 %v1525
        %v1716 = vpop.f32.mrf.mxu0
        %v1717 = vadd.f32 %v1576, %v1716
        %v1718 = vpop.f32.mrf.mxu0
        %v1719 = vpop.f32.mrf.mxu0
        %v1720 = vadd.f32 %v1576, %v1719
        %v1721 = vpop.f32.mrf.mxu0
        %1722 = vmatprep.mubr.bf16.mxu0 %v1528
        %1723 = vmatmul.mubr.bf16.gmra.mxu0 %v1527
        %v1724 = vpop.f32.mrf.mxu0
        %v1725 = vadd.f32 %v1576, %v1724
        %v1726 = vpop.f32.mrf.mxu0
        %v1727 = vpop.f32.mrf.mxu0
        %v1728 = vadd.f32 %v1576, %v1727
        %v1729 = vpop.f32.mrf.mxu0
        %1730 = vmatprep.mubr.bf16.mxu0 %v1530
        %1731 = vmatmul.mubr.bf16.gmra.mxu0 %v1529
        %v1732 = vpop.f32.mrf.mxu0
        %v1733 = vadd.f32 %v1576, %v1732
        %v1734 = vpop.f32.mrf.mxu0
        %v1735 = vpop.f32.mrf.mxu0
        %v1736 = vadd.f32 %v1576, %v1735
        %v1737 = vpop.f32.mrf.mxu0
        %1738 = vmatprep.mubr.bf16.mxu0 %v1532
        %1739 = vmatmul.mubr.bf16.gmra.mxu0 %v1531
        %v1740 = vpop.f32.mrf.mxu0
        %v1741 = vadd.f32 %v1576, %v1740
        %v1742 = vpop.f32.mrf.mxu0
        %v1743 = vpop.f32.mrf.mxu0
        %v1744 = vadd.f32 %v1576, %v1743
        %v1745 = vpop.f32.mrf.mxu0
        %1746 = vmatprep.mubr.bf16.mxu0 %v1534
        %1747 = vmatmul.mubr.bf16.gmra.mxu0 %v1533
        %v1748 = vpop.f32.mrf.mxu0
        %v1749 = vadd.f32 %v1576, %v1748
        %v1750 = vpop.f32.mrf.mxu0
        %v1751 = vpop.f32.mrf.mxu0
        %v1752 = vadd.f32 %v1576, %v1751
        %v1753 = vpop.f32.mrf.mxu0
        %1754 = vmatprep.mubr.bf16.mxu0 %v1536
        %1755 = vmatmul.mubr.bf16.gmra.mxu0 %v1535
        %v1756 = vpop.f32.mrf.mxu0
        %v1757 = vadd.f32 %v1576, %v1756
        %v1758 = vpop.f32.mrf.mxu0
        %v1759 = vpop.f32.mrf.mxu0
        %v1760 = vadd.f32 %v1576, %v1759
        %v1761 = vpop.f32.mrf.mxu0
        %1762 = vmatprep.mubr.bf16.mxu0 %v1538
        %1763 = vmatmul.mubr.bf16.gmra.mxu0 %v1537
        %v1764 = vpop.f32.mrf.mxu0
        %v1765 = vadd.f32 %v1576, %v1764
        %v1766 = vpop.f32.mrf.mxu0
        %v1767 = vpop.f32.mrf.mxu0
        %v1768 = vadd.f32 %v1576, %v1767
        %v1769 = vpop.f32.mrf.mxu0
        %1770 = vdwg.mxu0
        %1771 = vst [vmem:[%s558] sm:$0xff] %v1709
        %1772 = vst [vmem:[%s558 + $0x8] sm:$0xff] %v1712
        %1773 = vst [vmem:[%s558 + $0x10] sm:$0xff] %v1717
        %1774 = vst [vmem:[%s558 + $0x18] sm:$0xff] %v1720
        %1775 = vst [vmem:[%s558 + $0x20] sm:$0xff] %v1725
        %1776 = vst [vmem:[%s558 + $0x28] sm:$0xff] %v1728
        %1777 = vst [vmem:[%s558 + $0x30] sm:$0xff] %v1733
        %1778 = vst [vmem:[%s558 + $0x38] sm:$0xff] %v1736
        %1779 = vst [vmem:[%s558 + $0x40] sm:$0xff] %v1741
        %1780 = vst [vmem:[%s558 + $0x48] sm:$0xff] %v1744
        %1781 = vst [vmem:[%s558 + $0x50] sm:$0xff] %v1749
        %1782 = vst [vmem:[%s558 + $0x58] sm:$0xff] %v1752
        %1783 = vst [vmem:[%s558 + $0x60] sm:$0xff] %v1757
        %1784 = vst [vmem:[%s558 + $0x68] sm:$0xff] %v1760
        %1785 = vst [vmem:[%s558 + $0x70] sm:$0xff] %v1765
        %1786 = vst [vmem:[%s558 + $0x78] sm:$0xff] %v1768
        %v1787 = vld [vmem:[%s10] sm:$0xf]
        %v1788 = vld [vmem:[%s10 + $0x4] sm:$0xf]
        %v1789 = vld [vmem:[%s10 + $0x8] sm:$0xf]
        %v1790 = vld [vmem:[%s10 + $0xc] sm:$0xf]
        %v1791 = vld [vmem:[%s10 + $0x10] sm:$0xf]
        %v1792 = vld [vmem:[%s10 + $0x14] sm:$0xf]
        %v1793 = vld [vmem:[%s10 + $0x18] sm:$0xf]
        %v1794 = vld [vmem:[%s10 + $0x1c] sm:$0xf]
        %v1795 = vld [vmem:[%s10 + $0x20] sm:$0xf]
        %v1796 = vld [vmem:[%s10 + $0x24] sm:$0xf]
        %v1797 = vld [vmem:[%s10 + $0x28] sm:$0xf]
        %v1798 = vld [vmem:[%s10 + $0x2c] sm:$0xf]
        %v1799 = vld [vmem:[%s10 + $0x30] sm:$0xf]
        %v1800 = vld [vmem:[%s10 + $0x34] sm:$0xf]
        %v1801 = vld [vmem:[%s10 + $0x38] sm:$0xf]
        %v1802 = vld [vmem:[%s10 + $0x3c] sm:$0xf]
        %v1803 = vpack.c.bf16 %v1712, %v1709
        %v1804 = vpack.c.bf16 %v1720, %v1717
        %v1805 = vpack.c.bf16 %v1728, %v1725
        %v1806 = vpack.c.bf16 %v1736, %v1733
        %v1807 = vpack.c.bf16 %v1744, %v1741
        %v1808 = vpack.c.bf16 %v1752, %v1749
        %v1809 = vpack.c.bf16 %v1760, %v1757
        %v1810 = vpack.c.bf16 %v1768, %v1765
        %v1811 = vld [vmem:[%s11] sm:$0xf]
        %v1812 = vld [vmem:[%s11 + $0x4] sm:$0xf]
        %v1813 = vld [vmem:[%s11 + $0x8] sm:$0xf]
        %v1814 = vld [vmem:[%s11 + $0xc] sm:$0xf]
        %v1815 = vld [vmem:[%s11 + $0x10] sm:$0xf]
        %v1816 = vld [vmem:[%s11 + $0x14] sm:$0xf]
        %v1817 = vld [vmem:[%s11 + $0x18] sm:$0xf]
        %v1818 = vld [vmem:[%s11 + $0x1c] sm:$0xf]
        %v1819 = vld [vmem:[%s11 + $0x20] sm:$0xf]
        %v1820 = vld [vmem:[%s11 + $0x24] sm:$0xf]
        %v1821 = vld [vmem:[%s11 + $0x28] sm:$0xf]
        %v1822 = vld [vmem:[%s11 + $0x2c] sm:$0xf]
        %v1823 = vld [vmem:[%s11 + $0x30] sm:$0xf]
        %v1824 = vld [vmem:[%s11 + $0x34] sm:$0xf]
        %v1825 = vld [vmem:[%s11 + $0x38] sm:$0xf]
        %v1826 = vld [vmem:[%s11 + $0x3c] sm:$0xf]
        %v1843 = vunpack.c.l.b16 %v1811
        %v1844 = vunpack.c.l.b16 %v1812
        %v1845 = vunpack.c.l.b16 %v1813
        %v1846 = vunpack.c.l.b16 %v1814
        %v1847 = vunpack.c.l.b16 %v1815
        %v1848 = vunpack.c.l.b16 %v1816
        %v1849 = vunpack.c.l.b16 %v1817
        %v1850 = vunpack.c.l.b16 %v1818
        %v1851 = vunpack.c.l.b16 %v1819
        %v1852 = vunpack.c.l.b16 %v1820
        %v1853 = vunpack.c.l.b16 %v1821
        %v1854 = vunpack.c.l.b16 %v1822
        %v1855 = vunpack.c.l.b16 %v1823
        %v1856 = vunpack.c.l.b16 %v1824
        %v1857 = vunpack.c.l.b16 %v1825
        %v1858 = vunpack.c.l.b16 %v1826
        %v1859 = vpack.c.b16 %v1844, %v1843
        %v1860 = vpack.c.b16 %v1846, %v1845
        %v1861 = vpack.c.b16 %v1848, %v1847
        %v1862 = vpack.c.b16 %v1850, %v1849
        %v1863 = vpack.c.b16 %v1852, %v1851
        %v1864 = vpack.c.b16 %v1854, %v1853
        %v1865 = vpack.c.b16 %v1856, %v1855
        %v1866 = vpack.c.b16 %v1858, %v1857
        %1875 = vmatprep.subr.bf16.mxu0 0
        %1876 = vmatpush1.bf16.msra.mxu0 %v1866
        %1877 = vmatprep.subr.bf16.mxu0 0
        %1878 = vmatpush1.bf16.msra.mxu0 %v1865
        %1879 = vmatprep.subr.bf16.mxu0 0
        %1880 = vmatpush1.bf16.msra.mxu0 %v1864
        %1881 = vmatprep.subr.bf16.mxu0 0
        %1882 = vmatpush1.bf16.msra.mxu0 %v1863
        %1883 = vmatprep.subr.bf16.mxu0 0
        %1884 = vmatpush1.bf16.msra.mxu0 %v1862
        %1885 = vmatprep.subr.bf16.mxu0 0
        %1886 = vmatpush1.bf16.msra.mxu0 %v1861
        %1887 = vmatprep.subr.bf16.mxu0 0
        %1888 = vmatpush1.bf16.msra.mxu0 %v1860
        %1889 = vmatprep.subr.bf16.mxu0 0
        %1890 = vmatpush1.bf16.msra.mxu0 %v1859
        %1891 = vmatprep.subr.bf16.mxu0 0
        %1892 = vmatpush2.bf16.msra.mxu0 0
        %1893 = vmatprep.subr.bf16.mxu0 0
        %1894 = vmatpush2.bf16.msra.mxu0 0
        %1895 = vmatprep.subr.bf16.mxu0 0
        %1896 = vmatpush2.bf16.msra.mxu0 0
        %1897 = vmatprep.subr.bf16.mxu0 0
        %1898 = vmatpush2.bf16.msra.mxu0 0
        %1899 = vmatprep.subr.bf16.mxu0 0
        %1900 = vmatpush2.bf16.msra.mxu0 0
        %1901 = vmatprep.subr.bf16.mxu0 0
        %1902 = vmatpush2.bf16.msra.mxu0 0
        %1903 = vmatprep.subr.bf16.mxu0 0
        %1904 = vmatpush2.bf16.msra.mxu0 0
        %1905 = vmatprep.subr.bf16.mxu0 0
        %1906 = vmatpush2.bf16.msra.mxu0 0
        %1907 = vmatprep.mubr.bf16.mxu0 0
        %1908 = vmatmul.mubr.bf16.gmra.mxu0 %v1803
        %v1909 = vpop.f32.mrf.mxu0
        %v1910 = vadd.f32 0.0, %v1909
        %v1911 = vpop.f32.mrf.mxu0
        %v1912 = vpop.f32.mrf.mxu0
        %v1913 = vadd.f32 0.0, %v1912
        %v1914 = vpop.f32.mrf.mxu0
        %1915 = vmatprep.mubr.bf16.mxu0 0
        %1916 = vmatmul.mubr.bf16.gmra.mxu0 %v1804
        %v1917 = vpop.f32.mrf.mxu0
        %v1918 = vadd.f32 0.0, %v1917
        %v1919 = vpop.f32.mrf.mxu0
        %v1920 = vpop.f32.mrf.mxu0
        %v1921 = vadd.f32 0.0, %v1920
        %v1922 = vpop.f32.mrf.mxu0
        %1923 = vmatprep.mubr.bf16.mxu0 0
        %1924 = vmatmul.mubr.bf16.gmra.mxu0 %v1805
        %v1925 = vpop.f32.mrf.mxu0
        %v1926 = vadd.f32 0.0, %v1925
        %v1927 = vpop.f32.mrf.mxu0
        %v1928 = vpop.f32.mrf.mxu0
        %v1929 = vadd.f32 0.0, %v1928
        %v1930 = vpop.f32.mrf.mxu0
        %1931 = vmatprep.mubr.bf16.mxu0 0
        %1932 = vmatmul.mubr.bf16.gmra.mxu0 %v1806
        %v1933 = vpop.f32.mrf.mxu0
        %v1934 = vadd.f32 0.0, %v1933
        %v1935 = vpop.f32.mrf.mxu0
        %v1936 = vpop.f32.mrf.mxu0
        %v1937 = vadd.f32 0.0, %v1936
        %v1938 = vpop.f32.mrf.mxu0
        %1939 = vmatprep.mubr.bf16.mxu0 0
        %1940 = vmatmul.mubr.bf16.gmra.mxu0 %v1807
        %v1941 = vpop.f32.mrf.mxu0
        %v1942 = vadd.f32 0.0, %v1941
        %v1943 = vpop.f32.mrf.mxu0
        %v1944 = vpop.f32.mrf.mxu0
        %v1945 = vadd.f32 0.0, %v1944
        %v1946 = vpop.f32.mrf.mxu0
        %1947 = vmatprep.mubr.bf16.mxu0 0
        %1948 = vmatmul.mubr.bf16.gmra.mxu0 %v1808
        %v1949 = vpop.f32.mrf.mxu0
        %v1950 = vadd.f32 0.0, %v1949
        %v1951 = vpop.f32.mrf.mxu0
        %v1952 = vpop.f32.mrf.mxu0
        %v1953 = vadd.f32 0.0, %v1952
        %v1954 = vpop.f32.mrf.mxu0
        %1955 = vmatprep.mubr.bf16.mxu0 0
        %1956 = vmatmul.mubr.bf16.gmra.mxu0 %v1809
        %v1957 = vpop.f32.mrf.mxu0
        %v1958 = vadd.f32 0.0, %v1957
        %v1959 = vpop.f32.mrf.mxu0
        %v1960 = vpop.f32.mrf.mxu0
        %v1961 = vadd.f32 0.0, %v1960
        %v1962 = vpop.f32.mrf.mxu0
        %1963 = vmatprep.mubr.bf16.mxu0 0
        %1964 = vmatmul.mubr.bf16.gmra.mxu0 %v1810
        %v1965 = vpop.f32.mrf.mxu0
        %v1966 = vadd.f32 0.0, %v1965
        %v1967 = vpop.f32.mrf.mxu0
        %v1968 = vpop.f32.mrf.mxu0
        %v1969 = vadd.f32 0.0, %v1968
        %v1970 = vpop.f32.mrf.mxu0
        %1971 = vdwg.mxu0
        %v1988 = vunpack.c.l.b16 %v1787
        %v1989 = vunpack.c.l.b16 %v1788
        %v1990 = vunpack.c.l.b16 %v1789
        %v1991 = vunpack.c.l.b16 %v1790
        %v1992 = vunpack.c.l.b16 %v1791
        %v1993 = vunpack.c.l.b16 %v1792
        %v1994 = vunpack.c.l.b16 %v1793
        %v1995 = vunpack.c.l.b16 %v1794
        %v1996 = vunpack.c.l.b16 %v1795
        %v1997 = vunpack.c.l.b16 %v1796
        %v1998 = vunpack.c.l.b16 %v1797
        %v1999 = vunpack.c.l.b16 %v1798
        %v2000 = vunpack.c.l.b16 %v1799
        %v2001 = vunpack.c.l.b16 %v1800
        %v2002 = vunpack.c.l.b16 %v1801
        %v2003 = vunpack.c.l.b16 %v1802
        %v2004 = vpack.c.b16 %v1989, %v1988
        %v2005 = vpack.c.b16 %v1991, %v1990
        %v2006 = vpack.c.b16 %v1993, %v1992
        %v2007 = vpack.c.b16 %v1995, %v1994
        %v2008 = vpack.c.b16 %v1997, %v1996
        %v2009 = vpack.c.b16 %v1999, %v1998
        %v2010 = vpack.c.b16 %v2001, %v2000
        %v2011 = vpack.c.b16 %v2003, %v2002
        %2020 = vmatprep.subr.bf16.mxu0 0
        %2021 = vmatpush1.bf16.msra.mxu0 %v2011
        %2022 = vmatprep.subr.bf16.mxu0 0
        %2023 = vmatpush1.bf16.msra.mxu0 %v2010
        %2024 = vmatprep.subr.bf16.mxu0 0
        %2025 = vmatpush1.bf16.msra.mxu0 %v2009
        %2026 = vmatprep.subr.bf16.mxu0 0
        %2027 = vmatpush1.bf16.msra.mxu0 %v2008
        %2028 = vmatprep.subr.bf16.mxu0 0
        %2029 = vmatpush1.bf16.msra.mxu0 %v2007
        %2030 = vmatprep.subr.bf16.mxu0 0
        %2031 = vmatpush1.bf16.msra.mxu0 %v2006
        %2032 = vmatprep.subr.bf16.mxu0 0
        %2033 = vmatpush1.bf16.msra.mxu0 %v2005
        %2034 = vmatprep.subr.bf16.mxu0 0
        %2035 = vmatpush1.bf16.msra.mxu0 %v2004
        %2036 = vmatprep.subr.bf16.mxu0 0
        %2037 = vmatpush2.bf16.msra.mxu0 0
        %2038 = vmatprep.subr.bf16.mxu0 0
        %2039 = vmatpush2.bf16.msra.mxu0 0
        %2040 = vmatprep.subr.bf16.mxu0 0
        %2041 = vmatpush2.bf16.msra.mxu0 0
        %2042 = vmatprep.subr.bf16.mxu0 0
        %2043 = vmatpush2.bf16.msra.mxu0 0
        %2044 = vmatprep.subr.bf16.mxu0 0
        %2045 = vmatpush2.bf16.msra.mxu0 0
        %2046 = vmatprep.subr.bf16.mxu0 0
        %2047 = vmatpush2.bf16.msra.mxu0 0
        %2048 = vmatprep.subr.bf16.mxu0 0
        %2049 = vmatpush2.bf16.msra.mxu0 0
        %2050 = vmatprep.subr.bf16.mxu0 0
        %2051 = vmatpush2.bf16.msra.mxu0 0
        %2052 = vmatprep.mubr.bf16.mxu0 0
        %2053 = vmatmul.mubr.bf16.gmra.mxu0 %v644
        %v2054 = vpop.f32.mrf.mxu0
        %v2055 = vadd.f32 %v1910, %v2054
        %v2056 = vpop.f32.mrf.mxu0
        %v2057 = vpop.f32.mrf.mxu0
        %v2058 = vadd.f32 %v1913, %v2057
        %v2059 = vpop.f32.mrf.mxu0
        %2060 = vmatprep.mubr.bf16.mxu0 0
        %2061 = vmatmul.mubr.bf16.gmra.mxu0 %v645
        %v2062 = vpop.f32.mrf.mxu0
        %v2063 = vadd.f32 %v1918, %v2062
        %v2064 = vpop.f32.mrf.mxu0
        %v2065 = vpop.f32.mrf.mxu0
        %v2066 = vadd.f32 %v1921, %v2065
        %v2067 = vpop.f32.mrf.mxu0
        %2068 = vmatprep.mubr.bf16.mxu0 0
        %2069 = vmatmul.mubr.bf16.gmra.mxu0 %v646
        %v2070 = vpop.f32.mrf.mxu0
        %v2071 = vadd.f32 %v1926, %v2070
        %v2072 = vpop.f32.mrf.mxu0
        %v2073 = vpop.f32.mrf.mxu0
        %v2074 = vadd.f32 %v1929, %v2073
        %v2075 = vpop.f32.mrf.mxu0
        %2076 = vmatprep.mubr.bf16.mxu0 0
        %2077 = vmatmul.mubr.bf16.gmra.mxu0 %v647
        %v2078 = vpop.f32.mrf.mxu0
        %v2079 = vadd.f32 %v1934, %v2078
        %v2080 = vpop.f32.mrf.mxu0
        %v2081 = vpop.f32.mrf.mxu0
        %v2082 = vadd.f32 %v1937, %v2081
        %v2083 = vpop.f32.mrf.mxu0
        %2084 = vmatprep.mubr.bf16.mxu0 0
        %2085 = vmatmul.mubr.bf16.gmra.mxu0 %v648
        %v2086 = vpop.f32.mrf.mxu0
        %v2087 = vadd.f32 %v1942, %v2086
        %v2088 = vpop.f32.mrf.mxu0
        %v2089 = vpop.f32.mrf.mxu0
        %v2090 = vadd.f32 %v1945, %v2089
        %v2091 = vpop.f32.mrf.mxu0
        %2092 = vmatprep.mubr.bf16.mxu0 0
        %2093 = vmatmul.mubr.bf16.gmra.mxu0 %v649
        %v2094 = vpop.f32.mrf.mxu0
        %v2095 = vadd.f32 %v1950, %v2094
        %v2096 = vpop.f32.mrf.mxu0
        %v2097 = vpop.f32.mrf.mxu0
        %v2098 = vadd.f32 %v1953, %v2097
        %v2099 = vpop.f32.mrf.mxu0
        %2100 = vmatprep.mubr.bf16.mxu0 0
        %2101 = vmatmul.mubr.bf16.gmra.mxu0 %v650
        %v2102 = vpop.f32.mrf.mxu0
        %v2103 = vadd.f32 %v1958, %v2102
        %v2104 = vpop.f32.mrf.mxu0
        %v2105 = vpop.f32.mrf.mxu0
        %v2106 = vadd.f32 %v1961, %v2105
        %v2107 = vpop.f32.mrf.mxu0
        %2108 = vmatprep.mubr.bf16.mxu0 0
        %2109 = vmatmul.mubr.bf16.gmra.mxu0 %v651
        %v2110 = vpop.f32.mrf.mxu0
        %v2111 = vadd.f32 %v1966, %v2110
        %v2112 = vpop.f32.mrf.mxu0
        %v2113 = vpop.f32.mrf.mxu0
        %v2114 = vadd.f32 %v1969, %v2113
        %v2115 = vpop.f32.mrf.mxu0
        %2116 = vdwg.mxu0
        %v2117 = vld [vmem:[%s12] sm:$0x1]
        %v2119 = vlaneseq
        %v2120 = vshrl.u32 %v2119, 7
        %v2121 = vsub.s32 0, %v2120
        %v2122 = vrot.slane %v2117, %v2121
        %v2124 = vadd.f32 %v2055, %v2122
        %v2125 = vadd.f32 %v2058, %v2122
        %v2126 = vadd.f32 %v2063, %v2122
        %v2127 = vadd.f32 %v2066, %v2122
        %v2128 = vadd.f32 %v2071, %v2122
        %v2129 = vadd.f32 %v2074, %v2122
        %v2130 = vadd.f32 %v2079, %v2122
        %v2131 = vadd.f32 %v2082, %v2122
        %v2132 = vadd.f32 %v2087, %v2122
        %v2133 = vadd.f32 %v2090, %v2122
        %v2134 = vadd.f32 %v2095, %v2122
        %v2135 = vadd.f32 %v2098, %v2122
        %v2136 = vadd.f32 %v2103, %v2122
        %v2137 = vadd.f32 %v2106, %v2122
        %v2138 = vadd.f32 %v2111, %v2122
        %v2139 = vadd.f32 %v2114, %v2122
        %v2140 = vld [vmem:[%s13] sm:$0x1]
        %v2141 = vld [vmem:[%s14] sm:$0x1]
        %2142 = vadd.xlane.f32.xlu0 %v2124
        %v2143 = vpop.xlane.xlu0 %2142
        %2144 = vadd.xlane.f32.xlu0 %v2125
        %v2145 = vpop.xlane.xlu0 %2144
        %2146 = vadd.xlane.f32.xlu0 %v2126
        %v2147 = vpop.xlane.xlu0 %2146
        %2148 = vadd.xlane.f32.xlu0 %v2127
        %v2149 = vpop.xlane.xlu0 %2148
        %2150 = vadd.xlane.f32.xlu0 %v2128
        %v2151 = vpop.xlane.xlu0 %2150
        %2152 = vadd.xlane.f32.xlu0 %v2129
        %v2153 = vpop.xlane.xlu0 %2152
        %2154 = vadd.xlane.f32.xlu0 %v2130
        %v2155 = vpop.xlane.xlu0 %2154
        %2156 = vadd.xlane.f32.xlu0 %v2131
        %v2157 = vpop.xlane.xlu0 %2156
        %2158 = vadd.xlane.f32.xlu0 %v2132
        %v2159 = vpop.xlane.xlu0 %2158
        %2160 = vadd.xlane.f32.xlu0 %v2133
        %v2161 = vpop.xlane.xlu0 %2160
        %2162 = vadd.xlane.f32.xlu0 %v2134
        %v2163 = vpop.xlane.xlu0 %2162
        %2164 = vadd.xlane.f32.xlu0 %v2135
        %v2165 = vpop.xlane.xlu0 %2164
        %2166 = vadd.xlane.f32.xlu0 %v2136
        %v2167 = vpop.xlane.xlu0 %2166
        %2168 = vadd.xlane.f32.xlu0 %v2137
        %v2169 = vpop.xlane.xlu0 %2168
        %2170 = vadd.xlane.f32.xlu0 %v2138
        %v2171 = vpop.xlane.xlu0 %2170
        %2172 = vadd.xlane.f32.xlu0 %v2139
        %v2173 = vpop.xlane.xlu0 %2172
        %v2174 = vrcp.pop 128.0
        %v2175 = vmul.f32 %v2143, %v2174
        %v2176 = vmul.f32 %v2145, %v2174
        %v2177 = vmul.f32 %v2147, %v2174
        %v2178 = vmul.f32 %v2149, %v2174
        %v2179 = vmul.f32 %v2151, %v2174
        %v2180 = vmul.f32 %v2153, %v2174
        %v2181 = vmul.f32 %v2155, %v2174
        %v2182 = vmul.f32 %v2157, %v2174
        %v2183 = vmul.f32 %v2159, %v2174
        %v2184 = vmul.f32 %v2161, %v2174
        %v2185 = vmul.f32 %v2163, %v2174
        %v2186 = vmul.f32 %v2165, %v2174
        %v2187 = vmul.f32 %v2167, %v2174
        %v2188 = vmul.f32 %v2169, %v2174
        %v2189 = vmul.f32 %v2171, %v2174
        %v2190 = vmul.f32 %v2173, %v2174
        %v2191 = vmul.f32 %v2124, %v2124
        %v2192 = vmul.f32 %v2125, %v2125
        %v2193 = vmul.f32 %v2126, %v2126
        %v2194 = vmul.f32 %v2127, %v2127
        %v2195 = vmul.f32 %v2128, %v2128
        %v2196 = vmul.f32 %v2129, %v2129
        %v2197 = vmul.f32 %v2130, %v2130
        %v2198 = vmul.f32 %v2131, %v2131
        %v2199 = vmul.f32 %v2132, %v2132
        %v2200 = vmul.f32 %v2133, %v2133
        %v2201 = vmul.f32 %v2134, %v2134
        %v2202 = vmul.f32 %v2135, %v2135
        %v2203 = vmul.f32 %v2136, %v2136
        %v2204 = vmul.f32 %v2137, %v2137
        %v2205 = vmul.f32 %v2138, %v2138
        %v2206 = vmul.f32 %v2139, %v2139
        %2207 = vadd.xlane.f32.xlu0 %v2191
        %v2208 = vpop.xlane.xlu0 %2207
        %2209 = vadd.xlane.f32.xlu0 %v2192
        %v2210 = vpop.xlane.xlu0 %2209
        %2211 = vadd.xlane.f32.xlu0 %v2193
        %v2212 = vpop.xlane.xlu0 %2211
        %2213 = vadd.xlane.f32.xlu0 %v2194
        %v2214 = vpop.xlane.xlu0 %2213
        %2215 = vadd.xlane.f32.xlu0 %v2195
        %v2216 = vpop.xlane.xlu0 %2215
        %2217 = vadd.xlane.f32.xlu0 %v2196
        %v2218 = vpop.xlane.xlu0 %2217
        %2219 = vadd.xlane.f32.xlu0 %v2197
        %v2220 = vpop.xlane.xlu0 %2219
        %2221 = vadd.xlane.f32.xlu0 %v2198
        %v2222 = vpop.xlane.xlu0 %2221
        %2223 = vadd.xlane.f32.xlu0 %v2199
        %v2224 = vpop.xlane.xlu0 %2223
        %2225 = vadd.xlane.f32.xlu0 %v2200
        %v2226 = vpop.xlane.xlu0 %2225
        %2227 = vadd.xlane.f32.xlu0 %v2201
        %v2228 = vpop.xlane.xlu0 %2227
        %2229 = vadd.xlane.f32.xlu0 %v2202
        %v2230 = vpop.xlane.xlu0 %2229
        %2231 = vadd.xlane.f32.xlu0 %v2203
        %v2232 = vpop.xlane.xlu0 %2231
        %2233 = vadd.xlane.f32.xlu0 %v2204
        %v2234 = vpop.xlane.xlu0 %2233
        %2235 = vadd.xlane.f32.xlu0 %v2205
        %v2236 = vpop.xlane.xlu0 %2235
        %2237 = vadd.xlane.f32.xlu0 %v2206
        %v2238 = vpop.xlane.xlu0 %2237
        %v2239 = vmul.f32 %v2208, %v2174
        %v2240 = vmul.f32 %v2210, %v2174
        %v2241 = vmul.f32 %v2212, %v2174
        %v2242 = vmul.f32 %v2214, %v2174
        %v2243 = vmul.f32 %v2216, %v2174
        %v2244 = vmul.f32 %v2218, %v2174
        %v2245 = vmul.f32 %v2220, %v2174
        %v2246 = vmul.f32 %v2222, %v2174
        %v2247 = vmul.f32 %v2224, %v2174
        %v2248 = vmul.f32 %v2226, %v2174
        %v2249 = vmul.f32 %v2228, %v2174
        %v2250 = vmul.f32 %v2230, %v2174
        %v2251 = vmul.f32 %v2232, %v2174
        %v2252 = vmul.f32 %v2234, %v2174
        %v2253 = vmul.f32 %v2236, %v2174
        %v2254 = vmul.f32 %v2238, %v2174
        %v2255 = vmul.f32 %v2175, %v2175
        %v2256 = vmul.f32 %v2176, %v2176
        %v2257 = vmul.f32 %v2177, %v2177
        %v2258 = vmul.f32 %v2178, %v2178
        %v2259 = vmul.f32 %v2179, %v2179
        %v2260 = vmul.f32 %v2180, %v2180
        %v2261 = vmul.f32 %v2181, %v2181
        %v2262 = vmul.f32 %v2182, %v2182
        %v2263 = vmul.f32 %v2183, %v2183
        %v2264 = vmul.f32 %v2184, %v2184
        %v2265 = vmul.f32 %v2185, %v2185
        %v2266 = vmul.f32 %v2186, %v2186
        %v2267 = vmul.f32 %v2187, %v2187
        %v2268 = vmul.f32 %v2188, %v2188
        %v2269 = vmul.f32 %v2189, %v2189
        %v2270 = vmul.f32 %v2190, %v2190
        %v2271 = vsub.f32 %v2239, %v2255
        %v2272 = vsub.f32 %v2240, %v2256
        %v2273 = vsub.f32 %v2241, %v2257
        %v2274 = vsub.f32 %v2242, %v2258
        %v2275 = vsub.f32 %v2243, %v2259
        %v2276 = vsub.f32 %v2244, %v2260
        %v2277 = vsub.f32 %v2245, %v2261
        %v2278 = vsub.f32 %v2246, %v2262
        %v2279 = vsub.f32 %v2247, %v2263
        %v2280 = vsub.f32 %v2248, %v2264
        %v2281 = vsub.f32 %v2249, %v2265
        %v2282 = vsub.f32 %v2250, %v2266
        %v2283 = vsub.f32 %v2251, %v2267
        %v2284 = vsub.f32 %v2252, %v2268
        %v2285 = vsub.f32 %v2253, %v2269
        %v2286 = vsub.f32 %v2254, %v2270
        %v2287 = vsub.f32 %v2124, %v2175
        %v2288 = vsub.f32 %v2125, %v2176
        %v2289 = vsub.f32 %v2126, %v2177
        %v2290 = vsub.f32 %v2127, %v2178
        %v2291 = vsub.f32 %v2128, %v2179
        %v2292 = vsub.f32 %v2129, %v2180
        %v2293 = vsub.f32 %v2130, %v2181
        %v2294 = vsub.f32 %v2131, %v2182
        %v2295 = vsub.f32 %v2132, %v2183
        %v2296 = vsub.f32 %v2133, %v2184
        %v2297 = vsub.f32 %v2134, %v2185
        %v2298 = vsub.f32 %v2135, %v2186
        %v2299 = vsub.f32 %v2136, %v2187
        %v2300 = vsub.f32 %v2137, %v2188
        %v2301 = vsub.f32 %v2138, %v2189
        %v2302 = vsub.f32 %v2139, %v2190
        %v2303 = vadd.f32 %v2271, 1e-05
        %v2304 = vadd.f32 %v2272, 1e-05
        %v2305 = vadd.f32 %v2273, 1e-05
        %v2306 = vadd.f32 %v2274, 1e-05
        %v2307 = vadd.f32 %v2275, 1e-05
        %v2308 = vadd.f32 %v2276, 1e-05
        %v2309 = vadd.f32 %v2277, 1e-05
        %v2310 = vadd.f32 %v2278, 1e-05
        %v2311 = vadd.f32 %v2279, 1e-05
        %v2312 = vadd.f32 %v2280, 1e-05
        %v2313 = vadd.f32 %v2281, 1e-05
        %v2314 = vadd.f32 %v2282, 1e-05
        %v2315 = vadd.f32 %v2283, 1e-05
        %v2316 = vadd.f32 %v2284, 1e-05
        %v2317 = vadd.f32 %v2285, 1e-05
        %v2318 = vadd.f32 %v2286, 1e-05
        %v2319 = vrsqrt.pop %v2303
        %v2320 = vrsqrt.pop %v2304
        %v2321 = vrsqrt.pop %v2305
        %v2322 = vrsqrt.pop %v2306
        %v2323 = vrsqrt.pop %v2307
        %v2324 = vrsqrt.pop %v2308
        %v2325 = vrsqrt.pop %v2309
        %v2326 = vrsqrt.pop %v2310
        %v2327 = vrsqrt.pop %v2311
        %v2328 = vrsqrt.pop %v2312
        %v2329 = vrsqrt.pop %v2313
        %v2330 = vrsqrt.pop %v2314
        %v2331 = vrsqrt.pop %v2315
        %v2332 = vrsqrt.pop %v2316
        %v2333 = vrsqrt.pop %v2317
        %v2334 = vrsqrt.pop %v2318
        %v2335 = vmul.f32 %v2287, %v2319
        %v2336 = vmul.f32 %v2288, %v2320
        %v2337 = vmul.f32 %v2289, %v2321
        %v2338 = vmul.f32 %v2290, %v2322
        %v2339 = vmul.f32 %v2291, %v2323
        %v2340 = vmul.f32 %v2292, %v2324
        %v2341 = vmul.f32 %v2293, %v2325
        %v2342 = vmul.f32 %v2294, %v2326
        %v2343 = vmul.f32 %v2295, %v2327
        %v2344 = vmul.f32 %v2296, %v2328
        %v2345 = vmul.f32 %v2297, %v2329
        %v2346 = vmul.f32 %v2298, %v2330
        %v2347 = vmul.f32 %v2299, %v2331
        %v2348 = vmul.f32 %v2300, %v2332
        %v2349 = vmul.f32 %v2301, %v2333
        %v2350 = vmul.f32 %v2302, %v2334
        %v2352 = vlaneseq
        %v2353 = vshrl.u32 %v2352, 7
        %v2354 = vsub.s32 0, %v2353
        %v2355 = vrot.slane %v2140, %v2354
        %v2357 = vmul.f32 %v2335, %v2355
        %v2358 = vmul.f32 %v2336, %v2355
        %v2359 = vmul.f32 %v2337, %v2355
        %v2360 = vmul.f32 %v2338, %v2355
        %v2361 = vmul.f32 %v2339, %v2355
        %v2362 = vmul.f32 %v2340, %v2355
        %v2363 = vmul.f32 %v2341, %v2355
        %v2364 = vmul.f32 %v2342, %v2355
        %v2365 = vmul.f32 %v2343, %v2355
        %v2366 = vmul.f32 %v2344, %v2355
        %v2367 = vmul.f32 %v2345, %v2355
        %v2368 = vmul.f32 %v2346, %v2355
        %v2369 = vmul.f32 %v2347, %v2355
        %v2370 = vmul.f32 %v2348, %v2355
        %v2371 = vmul.f32 %v2349, %v2355
        %v2372 = vmul.f32 %v2350, %v2355
        %v2374 = vlaneseq
        %v2375 = vshrl.u32 %v2374, 7
        %v2376 = vsub.s32 0, %v2375
        %v2377 = vrot.slane %v2141, %v2376
        %v2379 = vadd.f32 %v2357, %v2377
        %v2380 = vadd.f32 %v2358, %v2377
        %v2381 = vadd.f32 %v2359, %v2377
        %v2382 = vadd.f32 %v2360, %v2377
        %v2383 = vadd.f32 %v2361, %v2377
        %v2384 = vadd.f32 %v2362, %v2377
        %v2385 = vadd.f32 %v2363, %v2377
        %v2386 = vadd.f32 %v2364, %v2377
        %v2387 = vadd.f32 %v2365, %v2377
        %v2388 = vadd.f32 %v2366, %v2377
        %v2389 = vadd.f32 %v2367, %v2377
        %v2390 = vadd.f32 %v2368, %v2377
        %v2391 = vadd.f32 %v2369, %v2377
        %v2392 = vadd.f32 %v2370, %v2377
        %v2393 = vadd.f32 %v2371, %v2377
        %v2394 = vadd.f32 %v2372, %v2377
        %v2395 = vtanh.pop %v2379
        %v2396 = vtanh.pop %v2380
        %v2397 = vtanh.pop %v2381
        %v2398 = vtanh.pop %v2382
        %v2399 = vtanh.pop %v2383
        %v2400 = vtanh.pop %v2384
        %v2401 = vtanh.pop %v2385
        %v2402 = vtanh.pop %v2386
        %v2403 = vtanh.pop %v2387
        %v2404 = vtanh.pop %v2388
        %v2405 = vtanh.pop %v2389
        %v2406 = vtanh.pop %v2390
        %v2407 = vtanh.pop %v2391
        %v2408 = vtanh.pop %v2392
        %v2409 = vtanh.pop %v2393
        %v2410 = vtanh.pop %v2394
        %2411 = vst [vmem:[%s551] sm:$0xff] %v2395
        %2412 = vst [vmem:[%s551 + $0x8] sm:$0xff] %v2396
        %2413 = vst [vmem:[%s551 + $0x10] sm:$0xff] %v2397
        %2414 = vst [vmem:[%s551 + $0x18] sm:$0xff] %v2398
        %2415 = vst [vmem:[%s551 + $0x20] sm:$0xff] %v2399
        %2416 = vst [vmem:[%s551 + $0x28] sm:$0xff] %v2400
        %2417 = vst [vmem:[%s551 + $0x30] sm:$0xff] %v2401
        %2418 = vst [vmem:[%s551 + $0x38] sm:$0xff] %v2402
        %2419 = vst [vmem:[%s551 + $0x40] sm:$0xff] %v2403
        %2420 = vst [vmem:[%s551 + $0x48] sm:$0xff] %v2404
        %2421 = vst [vmem:[%s551 + $0x50] sm:$0xff] %v2405
        %2422 = vst [vmem:[%s551 + $0x58] sm:$0xff] %v2406
        %2423 = vst [vmem:[%s551 + $0x60] sm:$0xff] %v2407
        %2424 = vst [vmem:[%s551 + $0x68] sm:$0xff] %v2408
        %2425 = vst [vmem:[%s551 + $0x70] sm:$0xff] %v2409
        %2426 = vst [vmem:[%s551 + $0x78] sm:$0xff] %v2410
        %s2427 = sand.u32 %s372, 1
        %s2428 = scalar_lea.sflag [#allocation3], %s2427
        %s2429 = sand.u32 %s372, 1
        %s2430 = smul.addr %s2429, 128
        %s2431 = scalar_lea.vmem [#allocation2], %s2430
        %s2432 = sand.u32 %s398, 1
        %s2433 = scalar_lea.sflag [#allocation5], %s2432
        %s2434 = sand.u32 %s398, 1
        %s2435 = smul.addr %s2434, 128
        %s2436 = scalar_lea.vmem [#allocation4], %s2435
        // Predicated region
        $region81: #{emotional_processor_forward.1} parent=79 // pred_check
          %p2437 = pneg %p382
        $region82: #{emotional_processor_forward.1} parent=79 // pred_check_branch
          %2439 = sbr.rel (%p2437) target = $region84
        $region83: #{emotional_processor_forward.1} parent=79 // pred_region
          %s2440 = smul.u32 16, %s34
          %s2442 = ssub.s32 2048, 2048
          %2443 = vsyncadd %s2428, %s2442
          %s2444 = smul.addr %s2440, 128
          %s2445 = scalar_lea.hbm %s15, %s2444
          %s2446 = sshll.u32 %s2431, 4
          %s2447 = int_to_ptr.vmem [resolvable:$true] %s2446
          %2452 = dma.vmem_to_hbm [thread:$0]  %s2447, 2048, %s2445, %s2428, 128, 128, 8
        $region84: #{emotional_processor_forward.1} parent=79 // pred_fallthru
          _
        // Predicated region
        $region85: #{emotional_processor_forward.1} parent=79 // pred_check
          %p2453 = pneg %p408
        $region86: #{emotional_processor_forward.1} parent=79 // pred_check_branch
          %2455 = sbr.rel (%p2453) target = $region88
        $region87: #{emotional_processor_forward.1} parent=79 // pred_region
          %s2456 = smul.u32 16, %s34
          %s2458 = ssub.s32 2048, 2048
          %2459 = vsyncadd %s2433, %s2458
          %s2460 = smul.addr %s2456, 128
          %s2461 = scalar_lea.hbm %s16, %s2460
          %s2462 = sshll.u32 %s2436, 4
          %s2463 = int_to_ptr.vmem [resolvable:$true] %s2462
          %2468 = dma.vmem_to_hbm [thread:$0]  %s2463, 2048, %s2461, %s2433, 128, 128, 8
        $region88: #{emotional_processor_forward.1} parent=79 // pred_fallthru
          _
      $region80: #{emotional_processor_forward.1} parent=5 // pred_fallthru
        _
      %p2469 = scmp.le.s32.totalorder 2, %s29
      // Predicated region
      $region89: #{emotional_processor_forward.1} parent=5 // pred_check
        %p2470 = pneg %p2469
      $region90: #{emotional_processor_forward.1} parent=5 // pred_check_branch
        %2472 = sbr.rel (%p2470) target = $region92
      $region91: #{emotional_processor_forward.1} parent=5 // pred_region
        %s2473 = ssub.s32 %s29, 2
        // Predicated region
        $region93: #{emotional_processor_forward.1} parent=91 // pred_check
          %p2474 = pneg %p388
        $region94: #{emotional_processor_forward.1} parent=91 // pred_check_branch
          %2476 = sbr.rel (%p2474) target = $region96
        $region95: #{emotional_processor_forward.1} parent=91 // pred_region
          %s2477 = sand.u32 %s373, 1
          %s2478 = scalar_lea.sflag [#allocation3], %s2477
          %s2479 = sand.u32 %s373, 1
          %s2480 = smul.addr %s2479, 128
          %s2481 = scalar_lea.vmem [#allocation2], %s2480
          %2482 = dma.done %s2478, 2048
        $region96: #{emotional_processor_forward.1} parent=91 // pred_fallthru
          _
        // Predicated region
        $region97: #{emotional_processor_forward.1} parent=91 // pred_check
          %p2483 = pneg %p414
        $region98: #{emotional_processor_forward.1} parent=91 // pred_check_branch
          %2485 = sbr.rel (%p2483) target = $region100
        $region99: #{emotional_processor_forward.1} parent=91 // pred_region
          %s2486 = sand.u32 %s399, 1
          %s2487 = scalar_lea.sflag [#allocation5], %s2486
          %s2488 = sand.u32 %s399, 1
          %s2489 = smul.addr %s2488, 128
          %s2490 = scalar_lea.vmem [#allocation4], %s2489
          %2491 = dma.done %s2487, 2048
        $region100: #{emotional_processor_forward.1} parent=91 // pred_fallthru
          _
      $region92: #{emotional_processor_forward.1} parent=5 // pred_fallthru
        _
    $region6: #{emotional_processor_forward.1} parent=1 // loop_footer
      %s33 = sadd.s32 1, %s29
    $region7: #{emotional_processor_forward.1} parent=1 // loop_footer_branch
      %28 = sbr.rel target = $region3
    $region8: #{emotional_processor_forward.1} parent=1 // loop_exit
      _
    %2492 = vsyncpa [#allocation3], 1
    %s2493 = scalar_lea.sflag [#allocation3], 1
    %2494 = vsyncpa %s2493, 1
    %2495 = vsyncpa [#allocation5], 1
    %s2496 = scalar_lea.sflag [#allocation5], 1
    %2497 = vsyncpa %s2496, 1

</llo_original>
